<compile_context>
chip_gen: v6e
topology: v6e:2x2x1
jax: 0.10.0
libtpu: 0.0.40
codegen_flags: <defaults>
</compile_context>

<pallas_src>
import math

import jax
import jax.numpy as jnp
from jax.experimental import pallas as pl
from jax.experimental.pallas import tpu as pltpu


def make_pscn_kernel(split_sizes):
    """Build a PSCN kernel for the given (static) per-layer output-part widths.

    Assumes non-final layer params were column-permuted so that the cascade
    half sits at columns [0:split] and the stash half at [split:2*split].
    """
    n_layers = len(split_sizes)
    eps = 1e-6

    def kernel(*refs):
        x_ref = refs[0]
        param_refs = refs[1:1 + 3 * n_layers]   # (w, b, g) per layer
        out_ref = refs[-1]

        def layer(h, w_ref, b_ref, g_ref):
            # MXU: single bf16 pass, f32 accumulation.  LHS cast to bf16 in
            # registers (free on the VPU); weights already arrive in bf16.
            y = jnp.dot(h.astype(jnp.bfloat16), w_ref[...],
                        preferred_element_type=jnp.float32)
            y = y + b_ref[...]
            # SiLU + RMSNorm in f32 (keep elementwise math f32 on all gens).
            y = y * jax.nn.sigmoid(y)
            ms = jnp.mean(y * y, axis=-1, keepdims=True)
            y = y * jax.lax.rsqrt(ms + eps)
            return y * g_ref[...]

        h = x_ref[...]
        parts = []
        for i in range(n_layers):
            w_ref, b_ref, g_ref = param_refs[3 * i:3 * i + 3]
            y = layer(h, w_ref, b_ref, g_ref)
            sp = split_sizes[i]
            if i < n_layers - 1:
                # Columns permuted at init: cascade = y[:, :sp] (zero-offset),
                # stash (original first half) = y[:, sp:].
                parts.append(y[:, sp:])
                h = y[:, :sp]
            else:
                parts.append(y)
        # Single concatenated store of the full output tile.
        out_ref[...] = jnp.concatenate(parts, axis=-1).astype(out_ref.dtype)

    return kernel


def init_pscn_params(key, input_dim, output_dim, depth):
    """Deterministic init matching PSCN.__init__ shapes (orthogonal, gain=sqrt(2))."""
    min_dim = 2 ** (depth - 1)
    assert depth >= 1
    assert output_dim >= min_dim and output_dim % min_dim == 0
    ortho = jax.nn.initializers.orthogonal(scale=math.sqrt(2.0))
    params = []
    in_dim, out_dim = input_dim, output_dim
    for _ in range(depth):
        key, sub = jax.random.split(key)
        w = ortho(sub, (in_dim, out_dim), jnp.float32)   # (in, out): y = x @ w
        b = jnp.zeros((out_dim,), jnp.float32)           # Linear bias = 0
        g = jnp.ones((out_dim,), jnp.float32)            # RMSNorm weight = 1
        params.append((w, b, g))
        in_dim = out_dim // 2
        out_dim //= 2
    return params


def _permute_cascade_first(params):
    """Permute non-final layer columns so the cascade half is at [0:half].

    Exact transformation: RMSNorm's mean over the full feature axis is
    permutation invariant, and the within-half ordering of the cascade is
    preserved, so downstream layers need no change.
    """
    n = len(params)
    out = []
    for i, (w, b, g) in enumerate(params):
        if i < n - 1:
            half = w.shape[1] // 2
            perm = jnp.concatenate(
                [jnp.arange(half, 2 * half), jnp.arange(0, half)])
            w = w[:, perm]
            b = b[perm]
            g = g[perm]
        out.append((w, b, g))
    return out


def pscn_forward(x, params, output_dim, *, tb=None, out_dtype=jnp.float32,
                 core_parallel=False):
    """PSCN forward.  x: (B, input_dim) float32 or bfloat16.

    core_parallel=True: use pltpu.CORE_PARALLEL on the batch axis so the grid
    is sharded across the two TensorCores of a v7x chip (each TC then sees a
    64 MiB VMEM budget).  Leave False on single-TC v5e/v6e.
    """
    n_layers = len(params)
    split_sizes = [output_dim // 2 ** (i + 1) for i in range(n_layers - 1)]
    split_sizes.append(output_dim // 2 ** (n_layers - 1))
    assert sum(split_sizes) == output_dim

    B, input_dim = x.shape

    # Batch tile: the kernel is HBM-stream bound at these feature widths, so
    # use the largest tile that fits the double-buffered x/out tiles plus the
    # VMEM-resident params.  512 fills the 256-wide MXU on v6e/v7x and stays
    # comfortably inside v7x's 64 MiB per-TC VMEM at typical PSCN dims.
    if tb is None:
        tb = B if B <= 512 else 512
    assert tb == B or tb % 8 == 0, "tb must be a multiple of 8 (or equal B)"

    grid = pl.cdiv(B, tb)   # pad-free: the final partial block is masked

    perm_params = _permute_cascade_first(params)
    flat_params = []
    for (w, b, g) in perm_params:
        flat_params += [w.astype(jnp.bfloat16),     # half the param DMA bytes
                        b.reshape(1, -1),           # bias/gain stay f32 (tiny)
                        g.reshape(1, -1)]

    kernel = make_pscn_kernel(split_sizes)

    # x / out are batch-tiled and pipelined over the grid; weights/bias/gain
    # use a constant index_map so they are DMA'd once and stay VMEM-resident.
    in_specs = [pl.BlockSpec((tb, input_dim), lambda i: (i, 0))]
    for (w, b, g) in perm_params:
        od = w.shape[1]
        in_specs += [
            pl.BlockSpec(w.shape, lambda i: (0, 0)),
            pl.BlockSpec((1, od), lambda i: (0, 0)),
            pl.BlockSpec((1, od), lambda i: (0, 0)),
        ]
    out_spec = pl.BlockSpec((tb, output_dim), lambda i: (i, 0))

    # VMEM budget estimate: double-buffered x/out tiles + params + live
    # intermediate margin.  Raise v5e's 16 MiB default; cap at 64 MiB (v7x).
    x_bytes = tb * input_dim * x.dtype.itemsize
    out_bytes = tb * output_dim * jnp.dtype(out_dtype).itemsize
    param_bytes = sum(w.size * 2 + (b.size + g.size) * 4
                      for (w, b, g) in perm_params)
    interm_bytes = 4 * tb * output_dim * 4
    est = 2 * (x_bytes + out_bytes + param_bytes) + interm_bytes + (8 << 20)
    vmem_limit = int(min(max(est, 32 << 20), 64 << 20))

    dim_sem = (pltpu.CORE_PARALLEL,) if core_parallel else ("parallel",)

    out = pl.pallas_call(
        kernel,
        out_shape=jax.ShapeDtypeStruct((B, output_dim), out_dtype),
        grid=(grid,),
        in_specs=in_specs,
        out_specs=out_spec,
        compiler_params=pltpu.CompilerParams(
            dimension_semantics=dim_sem,
            vmem_limit_bytes=vmem_limit),
    )(x, *flat_params)
    return out


def pscn_reference(x, params, output_dim):
    """Pure-JAX reference (mirrors the PyTorch forward, UNpermuted params)."""
    eps = 1e-6
    parts = []
    h = x
    n = len(params)
    for i, (w, b, g) in enumerate(params):
        y = h @ w + b
        y = y * jax.nn.sigmoid(y)
        y = y * jax.lax.rsqrt(jnp.mean(y * y, axis=-1, keepdims=True) + eps) * g
        if i < n - 1:
            sp = output_dim // 2 ** (i + 1)
            parts.append(y[:, :sp])
            h = y[:, sp:]
        else:
            parts.append(y)
    return jnp.concatenate(parts, axis=-1)


if __name__ == "__main__":
    key = jax.random.PRNGKey(0)
    k_x, k_p = jax.random.split(key)

    batch = 200          # deliberately NOT a multiple of tb: exercises the
                         # pad-free cdiv grid with a masked final block
    input_dim = 32
    output_dim = 64
    depth = 3            # min_dim = 4, output_dim % 4 == 0

    x = jax.random.normal(k_x, (batch, input_dim), dtype=jnp.float32)
    params = init_pscn_params(k_p, input_dim, output_dim, depth)

    # tb=64 -> 4 pipelined grid steps at this toy size (last one partial).
    out = pscn_forward(x, params, output_dim, tb=64)
    out = jax.block_until_ready(out)

    ref = pscn_reference(x, params, output_dim)
    assert out.shape == (batch, output_dim)
    # Single-pass bf16 MXU (f32 accumulation) -> loose-ish tolerance.
    assert jnp.allclose(out, ref, rtol=2e-2, atol=2e-2), "mismatch vs reference"

    print("KERNEL_OK")
</pallas_src>

<mosaic_0001>
module attributes {stable_mosaic.version = 11 : i64} {
  func.func @kernel(%arg0: i32, %arg1: memref<64x32xf32, #tpu.memory_space<vmem>>, %arg2: memref<32x64xbf16, #tpu.memory_space<vmem>>, %arg3: memref<1x64xf32, #tpu.memory_space<vmem>>, %arg4: memref<1x64xf32, #tpu.memory_space<vmem>>, %arg5: memref<32x32xbf16, #tpu.memory_space<vmem>>, %arg6: memref<1x32xf32, #tpu.memory_space<vmem>>, %arg7: memref<1x32xf32, #tpu.memory_space<vmem>>, %arg8: memref<16x16xbf16, #tpu.memory_space<vmem>>, %arg9: memref<1x16xf32, #tpu.memory_space<vmem>>, %arg10: memref<1x16xf32, #tpu.memory_space<vmem>>, %arg11: memref<64x64xf32, #tpu.memory_space<vmem>>) attributes {dimension_semantics = [#tpu.dimension_semantics<parallel>], iteration_bounds = array<i64: 4>, scalar_prefetch = 0 : i64, scratch_operands = 0 : i64, tpu.core_type = #tpu.core_type<tc>, window_params = [{transform_indices = @transform_0, window_bounds = array<i64: 64, 32>}, {pipeline_mode = #tpu.pipeline_mode<synchronous>, transform_indices = @transform_1, window_bounds = array<i64: 32, 64>}, {pipeline_mode = #tpu.pipeline_mode<synchronous>, transform_indices = @transform_2, window_bounds = array<i64: 1, 64>}, {pipeline_mode = #tpu.pipeline_mode<synchronous>, transform_indices = @transform_3, window_bounds = array<i64: 1, 64>}, {pipeline_mode = #tpu.pipeline_mode<synchronous>, transform_indices = @transform_4, window_bounds = array<i64: 32, 32>}, {pipeline_mode = #tpu.pipeline_mode<synchronous>, transform_indices = @transform_5, window_bounds = array<i64: 1, 32>}, {pipeline_mode = #tpu.pipeline_mode<synchronous>, transform_indices = @transform_6, window_bounds = array<i64: 1, 32>}, {pipeline_mode = #tpu.pipeline_mode<synchronous>, transform_indices = @transform_7, window_bounds = array<i64: 16, 16>}, {pipeline_mode = #tpu.pipeline_mode<synchronous>, transform_indices = @transform_8, window_bounds = array<i64: 1, 16>}, {pipeline_mode = #tpu.pipeline_mode<synchronous>, transform_indices = @transform_9, window_bounds = array<i64: 1, 16>}, {transform_indices = @transform_10, window_bounds = array<i64: 64, 64>}]} {
    %c0 = arith.constant 0 : index
    %c0_0 = arith.constant 0 : index
    %0 = vector.load %arg1[%c0, %c0_0] : memref<64x32xf32, #tpu.memory_space<vmem>>, vector<64x32xf32>
    %1 = arith.truncf %0 : vector<64x32xf32> to vector<64x32xbf16>
    %c0_1 = arith.constant 0 : index
    %c0_2 = arith.constant 0 : index
    %2 = vector.load %arg2[%c0_1, %c0_2] : memref<32x64xbf16, #tpu.memory_space<vmem>>, vector<32x64xbf16>
    %cst = arith.constant dense<0.000000e+00> : vector<64x64xf32>
    %3 = tpu.matmul %1, %2, %cst {dimension_numbers = #tpu.dot_dimension_numbers<[1], [0], [0], [1], [0, 0, 1, 1], [], []>} : vector<64x32xbf16>, vector<32x64xbf16>, vector<64x64xf32> -> vector<64x64xf32>
    %c0_3 = arith.constant 0 : index
    %c0_4 = arith.constant 0 : index
    %4 = vector.load %arg3[%c0_3, %c0_4] : memref<1x64xf32, #tpu.memory_space<vmem>>, vector<1x64xf32>
    %5 = vector.broadcast %4 : vector<1x64xf32> to vector<64x64xf32>
    %6 = arith.addf %3, %5 : vector<64x64xf32>
    %7 = arith.negf %6 : vector<64x64xf32>
    %8 = math.exp %7 : vector<64x64xf32>
    %cst_5 = arith.constant 1.000000e+00 : f32
    %9 = vector.broadcast %cst_5 : f32 to vector<64x64xf32>
    %10 = arith.addf %9, %8 : vector<64x64xf32>
    %11 = arith.divf %9, %10 : vector<64x64xf32>
    %12 = arith.mulf %6, %11 : vector<64x64xf32>
    %13 = arith.mulf %12, %12 : vector<64x64xf32>
    %cst_6 = arith.constant dense<0.000000e+00> : vector<64xf32>
    %14 = vector.multi_reduction <add>, %13, %cst_6 [1] : vector<64x64xf32> to vector<64xf32>
    %15 = vector.shape_cast %14 : vector<64xf32> to vector<64x1xf32>
    %cst_7 = arith.constant 6.400000e+01 : f32
    %16 = vector.broadcast %cst_7 : f32 to vector<64x1xf32>
    %17 = arith.divf %15, %16 : vector<64x1xf32>
    %cst_8 = arith.constant 9.99999997E-7 : f32
    %18 = vector.broadcast %cst_8 : f32 to vector<64x1xf32>
    %19 = arith.addf %17, %18 : vector<64x1xf32>
    %20 = math.rsqrt %19 : vector<64x1xf32>
    %21 = vector.broadcast %20 : vector<64x1xf32> to vector<64x64xf32>
    %22 = arith.mulf %12, %21 : vector<64x64xf32>
    %c0_9 = arith.constant 0 : index
    %c0_10 = arith.constant 0 : index
    %23 = vector.load %arg4[%c0_9, %c0_10] : memref<1x64xf32, #tpu.memory_space<vmem>>, vector<1x64xf32>
    %24 = vector.broadcast %23 : vector<1x64xf32> to vector<64x64xf32>
    %25 = arith.mulf %22, %24 : vector<64x64xf32>
    %26 = vector.extract_strided_slice %25 {offsets = [0, 32], sizes = [64, 32], strides = [1, 1]} : vector<64x64xf32> to vector<64x32xf32>
    %27 = vector.extract_strided_slice %25 {offsets = [0, 0], sizes = [64, 32], strides = [1, 1]} : vector<64x64xf32> to vector<64x32xf32>
    %28 = arith.truncf %27 : vector<64x32xf32> to vector<64x32xbf16>
    %c0_11 = arith.constant 0 : index
    %c0_12 = arith.constant 0 : index
    %29 = vector.load %arg5[%c0_11, %c0_12] : memref<32x32xbf16, #tpu.memory_space<vmem>>, vector<32x32xbf16>
    %cst_13 = arith.constant dense<0.000000e+00> : vector<64x32xf32>
    %30 = tpu.matmul %28, %29, %cst_13 {dimension_numbers = #tpu.dot_dimension_numbers<[1], [0], [0], [1], [0, 0, 1, 1], [], []>} : vector<64x32xbf16>, vector<32x32xbf16>, vector<64x32xf32> -> vector<64x32xf32>
    %c0_14 = arith.constant 0 : index
    %c0_15 = arith.constant 0 : index
    %31 = vector.load %arg6[%c0_14, %c0_15] : memref<1x32xf32, #tpu.memory_space<vmem>>, vector<1x32xf32>
    %32 = vector.broadcast %31 : vector<1x32xf32> to vector<64x32xf32>
    %33 = arith.addf %30, %32 : vector<64x32xf32>
    %34 = arith.negf %33 : vector<64x32xf32>
    %35 = math.exp %34 : vector<64x32xf32>
    %cst_16 = arith.constant 1.000000e+00 : f32
    %36 = vector.broadcast %cst_16 : f32 to vector<64x32xf32>
    %37 = arith.addf %36, %35 : vector<64x32xf32>
    %38 = arith.divf %36, %37 : vector<64x32xf32>
    %39 = arith.mulf %33, %38 : vector<64x32xf32>
    %40 = arith.mulf %39, %39 : vector<64x32xf32>
    %cst_17 = arith.constant dense<0.000000e+00> : vector<64xf32>
    %41 = vector.multi_reduction <add>, %40, %cst_17 [1] : vector<64x32xf32> to vector<64xf32>
    %42 = vector.shape_cast %41 : vector<64xf32> to vector<64x1xf32>
    %cst_18 = arith.constant 3.200000e+01 : f32
    %43 = vector.broadcast %cst_18 : f32 to vector<64x1xf32>
    %44 = arith.divf %42, %43 : vector<64x1xf32>
    %cst_19 = arith.constant 9.99999997E-7 : f32
    %45 = vector.broadcast %cst_19 : f32 to vector<64x1xf32>
    %46 = arith.addf %44, %45 : vector<64x1xf32>
    %47 = math.rsqrt %46 : vector<64x1xf32>
    %48 = vector.broadcast %47 : vector<64x1xf32> to vector<64x32xf32>
    %49 = arith.mulf %39, %48 : vector<64x32xf32>
    %c0_20 = arith.constant 0 : index
    %c0_21 = arith.constant 0 : index
    %50 = vector.load %arg7[%c0_20, %c0_21] : memref<1x32xf32, #tpu.memory_space<vmem>>, vector<1x32xf32>
    %51 = vector.broadcast %50 : vector<1x32xf32> to vector<64x32xf32>
    %52 = arith.mulf %49, %51 : vector<64x32xf32>
    %53 = vector.extract_strided_slice %52 {offsets = [0, 16], sizes = [64, 16], strides = [1, 1]} : vector<64x32xf32> to vector<64x16xf32>
    %54 = vector.extract_strided_slice %52 {offsets = [0, 0], sizes = [64, 16], strides = [1, 1]} : vector<64x32xf32> to vector<64x16xf32>
    %55 = arith.truncf %54 : vector<64x16xf32> to vector<64x16xbf16>
    %c0_22 = arith.constant 0 : index
    %c0_23 = arith.constant 0 : index
    %56 = vector.load %arg8[%c0_22, %c0_23] : memref<16x16xbf16, #tpu.memory_space<vmem>>, vector<16x16xbf16>
    %cst_24 = arith.constant dense<0.000000e+00> : vector<64x16xf32>
    %57 = tpu.matmul %55, %56, %cst_24 {dimension_numbers = #tpu.dot_dimension_numbers<[1], [0], [0], [1], [0, 0, 1, 1], [], []>} : vector<64x16xbf16>, vector<16x16xbf16>, vector<64x16xf32> -> vector<64x16xf32>
    %c0_25 = arith.constant 0 : index
    %c0_26 = arith.constant 0 : index
    %58 = vector.load %arg9[%c0_25, %c0_26] : memref<1x16xf32, #tpu.memory_space<vmem>>, vector<1x16xf32>
    %59 = vector.broadcast %58 : vector<1x16xf32> to vector<64x16xf32>
    %60 = arith.addf %57, %59 : vector<64x16xf32>
    %61 = arith.negf %60 : vector<64x16xf32>
    %62 = math.exp %61 : vector<64x16xf32>
    %cst_27 = arith.constant 1.000000e+00 : f32
    %63 = vector.broadcast %cst_27 : f32 to vector<64x16xf32>
    %64 = arith.addf %63, %62 : vector<64x16xf32>
    %65 = arith.divf %63, %64 : vector<64x16xf32>
    %66 = arith.mulf %60, %65 : vector<64x16xf32>
    %67 = arith.mulf %66, %66 : vector<64x16xf32>
    %cst_28 = arith.constant dense<0.000000e+00> : vector<64xf32>
    %68 = vector.multi_reduction <add>, %67, %cst_28 [1] : vector<64x16xf32> to vector<64xf32>
    %69 = vector.shape_cast %68 : vector<64xf32> to vector<64x1xf32>
    %cst_29 = arith.constant 1.600000e+01 : f32
    %70 = vector.broadcast %cst_29 : f32 to vector<64x1xf32>
    %71 = arith.divf %69, %70 : vector<64x1xf32>
    %cst_30 = arith.constant 9.99999997E-7 : f32
    %72 = vector.broadcast %cst_30 : f32 to vector<64x1xf32>
    %73 = arith.addf %71, %72 : vector<64x1xf32>
    %74 = math.rsqrt %73 : vector<64x1xf32>
    %75 = vector.broadcast %74 : vector<64x1xf32> to vector<64x16xf32>
    %76 = arith.mulf %66, %75 : vector<64x16xf32>
    %c0_31 = arith.constant 0 : index
    %c0_32 = arith.constant 0 : index
    %77 = vector.load %arg10[%c0_31, %c0_32] : memref<1x16xf32, #tpu.memory_space<vmem>>, vector<1x16xf32>
    %78 = vector.broadcast %77 : vector<1x16xf32> to vector<64x16xf32>
    %79 = arith.mulf %76, %78 : vector<64x16xf32>
    %80 = tpu.concatenate %26, %53, %79 in 1 : vector<64x32xf32>, vector<64x16xf32>, vector<64x16xf32> -> vector<64x64xf32>
    %c0_33 = arith.constant 0 : index
    %c0_34 = arith.constant 0 : index
    %81 = vector.load %arg11[%c0_33, %c0_34] : memref<64x64xf32, #tpu.memory_space<vmem>>, vector<64x64xf32>
    tpu.vector_store %arg11[%c0_33, %c0_34], %80 {strides = array<i32>} : memref<64x64xf32, #tpu.memory_space<vmem>>, vector<64x64xf32>,
    return
  }
  func.func @transform_0(%arg0: i32) -> (i32, i32) {
    %c0_i32 = arith.constant 0 : i32
    %c0_i32_0 = arith.constant 0 : i32
    return %arg0, %c0_i32 : i32, i32
  }
  func.func @transform_1(%arg0: i32) -> (i32, i32) {
    %c0_i32 = arith.constant 0 : i32
    %c0_i32_0 = arith.constant 0 : i32
    %c0_i32_1 = arith.constant 0 : i32
    return %c0_i32, %c0_i32_0 : i32, i32
  }
  func.func @transform_2(%arg0: i32) -> (i32, i32) {
    %c0_i32 = arith.constant 0 : i32
    %c0_i32_0 = arith.constant 0 : i32
    %c0_i32_1 = arith.constant 0 : i32
    return %c0_i32, %c0_i32_0 : i32, i32
  }
  func.func @transform_3(%arg0: i32) -> (i32, i32) {
    %c0_i32 = arith.constant 0 : i32
    %c0_i32_0 = arith.constant 0 : i32
    %c0_i32_1 = arith.constant 0 : i32
    return %c0_i32, %c0_i32_0 : i32, i32
  }
  func.func @transform_4(%arg0: i32) -> (i32, i32) {
    %c0_i32 = arith.constant 0 : i32
    %c0_i32_0 = arith.constant 0 : i32
    %c0_i32_1 = arith.constant 0 : i32
    return %c0_i32, %c0_i32_0 : i32, i32
  }
  func.func @transform_5(%arg0: i32) -> (i32, i32) {
    %c0_i32 = arith.constant 0 : i32
    %c0_i32_0 = arith.constant 0 : i32
    %c0_i32_1 = arith.constant 0 : i32
    return %c0_i32, %c0_i32_0 : i32, i32
  }
  func.func @transform_6(%arg0: i32) -> (i32, i32) {
    %c0_i32 = arith.constant 0 : i32
    %c0_i32_0 = arith.constant 0 : i32
    %c0_i32_1 = arith.constant 0 : i32
    return %c0_i32, %c0_i32_0 : i32, i32
  }
  func.func @transform_7(%arg0: i32) -> (i32, i32) {
    %c0_i32 = arith.constant 0 : i32
    %c0_i32_0 = arith.constant 0 : i32
    %c0_i32_1 = arith.constant 0 : i32
    return %c0_i32, %c0_i32_0 : i32, i32
  }
  func.func @transform_8(%arg0: i32) -> (i32, i32) {
    %c0_i32 = arith.constant 0 : i32
    %c0_i32_0 = arith.constant 0 : i32
    %c0_i32_1 = arith.constant 0 : i32
    return %c0_i32, %c0_i32_0 : i32, i32
  }
  func.func @transform_9(%arg0: i32) -> (i32, i32) {
    %c0_i32 = arith.constant 0 : i32
    %c0_i32_0 = arith.constant 0 : i32
    %c0_i32_1 = arith.constant 0 : i32
    return %c0_i32, %c0_i32_0 : i32, i32
  }
  func.func @transform_10(%arg0: i32) -> (i32, i32) {
    %c0_i32 = arith.constant 0 : i32
    %c0_i32_0 = arith.constant 0 : i32
    return %arg0, %c0_i32 : i32, i32
  }
}

</mosaic_0001>

<llo_original>
// kernel: tpu_custom_call.1
$region0: #{tpu_custom_call.1}
  #allocation0 [shape = 'u32[]', space=smem, size = 0x4, offset = 0x4, fixed_abs, tag = 'smem constant byte address 0x4 - core index']
  #allocation1 [shape = 'u32[144,128]{1,0:T(1,128)}', space=vmem, size = 0x12000, scoped, tag = 'internal scratch']
  %s0 = inlined_call_operand.vmem [shape: f32[200,32], index: 0, kind: input, shape index: {}]
  %s1 = inlined_call_operand.vmem [shape: bf16[32,64], index: 1, kind: input, shape index: {}]
  %s2 = inlined_call_operand.vmem [shape: f32[1,64], index: 2, kind: input, shape index: {}]
  %s3 = inlined_call_operand.vmem [shape: f32[1,64], index: 3, kind: input, shape index: {}]
  %s4 = inlined_call_operand.vmem [shape: bf16[32,32], index: 4, kind: input, shape index: {}]
  %s5 = inlined_call_operand.vmem [shape: f32[1,32], index: 5, kind: input, shape index: {}]
  %s6 = inlined_call_operand.vmem [shape: f32[1,32], index: 6, kind: input, shape index: {}]
  %s7 = inlined_call_operand.vmem [shape: bf16[16,16], index: 7, kind: input, shape index: {}]
  %s8 = inlined_call_operand.vmem [shape: f32[1,16], index: 8, kind: input, shape index: {}]
  %s9 = inlined_call_operand.vmem [shape: f32[1,16], index: 9, kind: input, shape index: {}]
  %s10 = inlined_call_operand.vmem [shape: f32[200,64], index: 10, kind: output, shape index: {}]
  %s11 = sld [smem:[#allocation0]]
  $region121: #{tpu_custom_call.1} parent=0
    _
  %s13 = ssub.s32 1, %s11
  %s14 = scalar_select 0, %s13, %s11
  $region1: #{tpu_custom_call.1} parent=0
    #allocation2 [shape = 'u8[65536]{0}', space=vmem, size = 0x10000, scoped, tag = 'output window, operand 0']
    loop: start=0, step=1, limit=6
    $region2: #{tpu_custom_call.1} parent=1 // loop_pre_header
      _
    $region3: #{tpu_custom_call.1} parent=1 // loop_header
      %s16 = sphi 0, %s20
      %p17 = scmp.ge.s32.totalorder %s16, 6
      %s26 = sphi 0, %s28
      %s29 = sphi 0, %s26
      %s30 = sphi 0, %s29
      %s46 = sphi 0, %s30
      %s50 = sphi 0, %s50
      %s52 = sphi 0, %s50
      %s53 = sphi 0, %s52
      %s67 = sphi 0, %s53
      %s71 = sphi 0, %s71
      %s73 = sphi 0, %s71
      %s74 = sphi 0, %s73
      %s88 = sphi 0, %s74
      %s92 = sphi 0, %s92
      %s94 = sphi 0, %s92
      %s95 = sphi 0, %s94
      %s109 = sphi 0, %s95
      %s113 = sphi 0, %s113
      %s115 = sphi 0, %s113
      %s116 = sphi 0, %s115
      %s130 = sphi 0, %s116
      %s134 = sphi 0, %s134
      %s136 = sphi 0, %s134
      %s137 = sphi 0, %s136
      %s151 = sphi 0, %s137
      %s155 = sphi 0, %s155
      %s157 = sphi 0, %s155
      %s158 = sphi 0, %s157
      %s172 = sphi 0, %s158
      %s176 = sphi 0, %s176
      %s178 = sphi 0, %s176
      %s179 = sphi 0, %s178
      %s193 = sphi 0, %s179
      %s197 = sphi 0, %s197
      %s199 = sphi 0, %s197
      %s200 = sphi 0, %s199
      %s214 = sphi 0, %s200
      %s218 = sphi 0, %s218
      %s220 = sphi 0, %s218
      %s221 = sphi 0, %s220
      %s235 = sphi 0, %s221
      %s241 = sphi 0, %s243
      %s244 = sphi 0, %s241
      %s245 = sphi 0, %s244
      %s261 = sphi 0, %s245
    $region4: #{tpu_custom_call.1} parent=1 // loop_header_branch
      %19 = sbr.rel (%p17) target = $region8
    $region5: #{tpu_custom_call.1} parent=1 // loop_body
      %s21 = ssub.s32 %s16, 1
      %s22 = ssub.s32 %s16, 2
      %s23 = sadd.s32 %s16, 1
      %s24 = ssub.s32 %s16, %s23
      %p25 = scmp.eq.s32.totalorder %s24, 0
      %s27 = sadd.s32 %s26, 1
      %s28 = scalar_select %p25, %s26, %s27
      %p31 = pneg %p25
      %p32 = scmp.eq.s32.totalorder %s16, 3
      %p33 = por %p31, %p32
      %p34 = scmp.ne.s32.totalorder %s26, %s29
      %p35 = scmp.eq.s32.totalorder %s16, 0
      %p36 = por %p34, %p35
      %p37 = scmp.ne.s32.totalorder %s26, %s29
      %p38 = scmp.eq.s32.totalorder %s21, 3
      %p39 = por %p37, %p38
      %p40 = scmp.ne.s32.totalorder %s29, %s30
      %p41 = scmp.eq.s32.totalorder %s21, 0
      %p42 = por %p40, %p41
      %p43 = scmp.ne.s32.totalorder %s29, %s30
      %p44 = scmp.eq.s32.totalorder %s22, 3
      %p45 = por %p43, %p44
      %p47 = scmp.ne.s32.totalorder %s30, %s46
      %p48 = scmp.eq.s32.totalorder %s22, 0
      %p49 = por %p47, %p48
      %s51 = sadd.s32 %s50, 1
      %p54 = scmp.eq.s32.totalorder %s16, 3
      %p55 = scmp.ne.s32.totalorder %s50, %s52
      %p56 = scmp.eq.s32.totalorder %s16, 0
      %p57 = por %p55, %p56
      %p58 = scmp.ne.s32.totalorder %s50, %s52
      %p59 = scmp.eq.s32.totalorder %s21, 3
      %p60 = por %p58, %p59
      %p61 = scmp.ne.s32.totalorder %s52, %s53
      %p62 = scmp.eq.s32.totalorder %s21, 0
      %p63 = por %p61, %p62
      %p64 = scmp.ne.s32.totalorder %s52, %s53
      %p65 = scmp.eq.s32.totalorder %s22, 3
      %p66 = por %p64, %p65
      %p68 = scmp.ne.s32.totalorder %s53, %s67
      %p69 = scmp.eq.s32.totalorder %s22, 0
      %p70 = por %p68, %p69
      %s72 = sadd.s32 %s71, 1
      %p75 = scmp.eq.s32.totalorder %s16, 3
      %p76 = scmp.ne.s32.totalorder %s71, %s73
      %p77 = scmp.eq.s32.totalorder %s16, 0
      %p78 = por %p76, %p77
      %p79 = scmp.ne.s32.totalorder %s71, %s73
      %p80 = scmp.eq.s32.totalorder %s21, 3
      %p81 = por %p79, %p80
      %p82 = scmp.ne.s32.totalorder %s73, %s74
      %p83 = scmp.eq.s32.totalorder %s21, 0
      %p84 = por %p82, %p83
      %p85 = scmp.ne.s32.totalorder %s73, %s74
      %p86 = scmp.eq.s32.totalorder %s22, 3
      %p87 = por %p85, %p86
      %p89 = scmp.ne.s32.totalorder %s74, %s88
      %p90 = scmp.eq.s32.totalorder %s22, 0
      %p91 = por %p89, %p90
      %s93 = sadd.s32 %s92, 1
      %p96 = scmp.eq.s32.totalorder %s16, 3
      %p97 = scmp.ne.s32.totalorder %s92, %s94
      %p98 = scmp.eq.s32.totalorder %s16, 0
      %p99 = por %p97, %p98
      %p100 = scmp.ne.s32.totalorder %s92, %s94
      %p101 = scmp.eq.s32.totalorder %s21, 3
      %p102 = por %p100, %p101
      %p103 = scmp.ne.s32.totalorder %s94, %s95
      %p104 = scmp.eq.s32.totalorder %s21, 0
      %p105 = por %p103, %p104
      %p106 = scmp.ne.s32.totalorder %s94, %s95
      %p107 = scmp.eq.s32.totalorder %s22, 3
      %p108 = por %p106, %p107
      %p110 = scmp.ne.s32.totalorder %s95, %s109
      %p111 = scmp.eq.s32.totalorder %s22, 0
      %p112 = por %p110, %p111
      %s114 = sadd.s32 %s113, 1
      %p117 = scmp.eq.s32.totalorder %s16, 3
      %p118 = scmp.ne.s32.totalorder %s113, %s115
      %p119 = scmp.eq.s32.totalorder %s16, 0
      %p120 = por %p118, %p119
      %p121 = scmp.ne.s32.totalorder %s113, %s115
      %p122 = scmp.eq.s32.totalorder %s21, 3
      %p123 = por %p121, %p122
      %p124 = scmp.ne.s32.totalorder %s115, %s116
      %p125 = scmp.eq.s32.totalorder %s21, 0
      %p126 = por %p124, %p125
      %p127 = scmp.ne.s32.totalorder %s115, %s116
      %p128 = scmp.eq.s32.totalorder %s22, 3
      %p129 = por %p127, %p128
      %p131 = scmp.ne.s32.totalorder %s116, %s130
      %p132 = scmp.eq.s32.totalorder %s22, 0
      %p133 = por %p131, %p132
      %s135 = sadd.s32 %s134, 1
      %p138 = scmp.eq.s32.totalorder %s16, 3
      %p139 = scmp.ne.s32.totalorder %s134, %s136
      %p140 = scmp.eq.s32.totalorder %s16, 0
      %p141 = por %p139, %p140
      %p142 = scmp.ne.s32.totalorder %s134, %s136
      %p143 = scmp.eq.s32.totalorder %s21, 3
      %p144 = por %p142, %p143
      %p145 = scmp.ne.s32.totalorder %s136, %s137
      %p146 = scmp.eq.s32.totalorder %s21, 0
      %p147 = por %p145, %p146
      %p148 = scmp.ne.s32.totalorder %s136, %s137
      %p149 = scmp.eq.s32.totalorder %s22, 3
      %p150 = por %p148, %p149
      %p152 = scmp.ne.s32.totalorder %s137, %s151
      %p153 = scmp.eq.s32.totalorder %s22, 0
      %p154 = por %p152, %p153
      %s156 = sadd.s32 %s155, 1
      %p159 = scmp.eq.s32.totalorder %s16, 3
      %p160 = scmp.ne.s32.totalorder %s155, %s157
      %p161 = scmp.eq.s32.totalorder %s16, 0
      %p162 = por %p160, %p161
      %p163 = scmp.ne.s32.totalorder %s155, %s157
      %p164 = scmp.eq.s32.totalorder %s21, 3
      %p165 = por %p163, %p164
      %p166 = scmp.ne.s32.totalorder %s157, %s158
      %p167 = scmp.eq.s32.totalorder %s21, 0
      %p168 = por %p166, %p167
      %p169 = scmp.ne.s32.totalorder %s157, %s158
      %p170 = scmp.eq.s32.totalorder %s22, 3
      %p171 = por %p169, %p170
      %p173 = scmp.ne.s32.totalorder %s158, %s172
      %p174 = scmp.eq.s32.totalorder %s22, 0
      %p175 = por %p173, %p174
      %s177 = sadd.s32 %s176, 1
      %p180 = scmp.eq.s32.totalorder %s16, 3
      %p181 = scmp.ne.s32.totalorder %s176, %s178
      %p182 = scmp.eq.s32.totalorder %s16, 0
      %p183 = por %p181, %p182
      %p184 = scmp.ne.s32.totalorder %s176, %s178
      %p185 = scmp.eq.s32.totalorder %s21, 3
      %p186 = por %p184, %p185
      %p187 = scmp.ne.s32.totalorder %s178, %s179
      %p188 = scmp.eq.s32.totalorder %s21, 0
      %p189 = por %p187, %p188
      %p190 = scmp.ne.s32.totalorder %s178, %s179
      %p191 = scmp.eq.s32.totalorder %s22, 3
      %p192 = por %p190, %p191
      %p194 = scmp.ne.s32.totalorder %s179, %s193
      %p195 = scmp.eq.s32.totalorder %s22, 0
      %p196 = por %p194, %p195
      %s198 = sadd.s32 %s197, 1
      %p201 = scmp.eq.s32.totalorder %s16, 3
      %p202 = scmp.ne.s32.totalorder %s197, %s199
      %p203 = scmp.eq.s32.totalorder %s16, 0
      %p204 = por %p202, %p203
      %p205 = scmp.ne.s32.totalorder %s197, %s199
      %p206 = scmp.eq.s32.totalorder %s21, 3
      %p207 = por %p205, %p206
      %p208 = scmp.ne.s32.totalorder %s199, %s200
      %p209 = scmp.eq.s32.totalorder %s21, 0
      %p210 = por %p208, %p209
      %p211 = scmp.ne.s32.totalorder %s199, %s200
      %p212 = scmp.eq.s32.totalorder %s22, 3
      %p213 = por %p211, %p212
      %p215 = scmp.ne.s32.totalorder %s200, %s214
      %p216 = scmp.eq.s32.totalorder %s22, 0
      %p217 = por %p215, %p216
      %s219 = sadd.s32 %s218, 1
      %p222 = scmp.eq.s32.totalorder %s16, 3
      %p223 = scmp.ne.s32.totalorder %s218, %s220
      %p224 = scmp.eq.s32.totalorder %s16, 0
      %p225 = por %p223, %p224
      %p226 = scmp.ne.s32.totalorder %s218, %s220
      %p227 = scmp.eq.s32.totalorder %s21, 3
      %p228 = por %p226, %p227
      %p229 = scmp.ne.s32.totalorder %s220, %s221
      %p230 = scmp.eq.s32.totalorder %s21, 0
      %p231 = por %p229, %p230
      %p232 = scmp.ne.s32.totalorder %s220, %s221
      %p233 = scmp.eq.s32.totalorder %s22, 3
      %p234 = por %p232, %p233
      %p236 = scmp.ne.s32.totalorder %s221, %s235
      %p237 = scmp.eq.s32.totalorder %s22, 0
      %p238 = por %p236, %p237
      %s239 = ssub.s32 %s16, %s23
      %p240 = scmp.eq.s32.totalorder %s239, 0
      %s242 = sadd.s32 %s241, 1
      %s243 = scalar_select %p240, %s241, %s242
      %p246 = pneg %p240
      %p247 = scmp.eq.s32.totalorder %s16, 3
      %p248 = por %p246, %p247
      %p249 = scmp.ne.s32.totalorder %s241, %s244
      %p250 = scmp.eq.s32.totalorder %s16, 0
      %p251 = por %p249, %p250
      %p252 = scmp.ne.s32.totalorder %s241, %s244
      %p253 = scmp.eq.s32.totalorder %s21, 3
      %p254 = por %p252, %p253
      %p255 = scmp.ne.s32.totalorder %s244, %s245
      %p256 = scmp.eq.s32.totalorder %s21, 0
      %p257 = por %p255, %p256
      %p258 = scmp.ne.s32.totalorder %s244, %s245
      %p259 = scmp.eq.s32.totalorder %s22, 3
      %p260 = por %p258, %p259
      %p262 = scmp.ne.s32.totalorder %s245, %s261
      %p263 = scmp.eq.s32.totalorder %s22, 0
      %p264 = por %p262, %p263
      %p265 = scmp.le.s32.totalorder 1, %s16
      %p266 = scmp.lt.s32.totalorder %s16, 5
      %p267 = pnand %p265, %p266
      %p268 = pneg %p267
      // Predicated region
      $region9: #{tpu_custom_call.1} parent=5 // pred_check
        _
      $region10: #{tpu_custom_call.1} parent=5 // pred_check_branch
        %270 = sbr.rel (%p267) target = $region12
      $region11: #{tpu_custom_call.1} parent=5 // pred_region
        %s271 = ssub.s32 %s16, 1
        // Predicated region
        $region13: #{tpu_custom_call.1} parent=11 // pred_check
          %p272 = pneg %p63
        $region14: #{tpu_custom_call.1} parent=11 // pred_check_branch
          %274 = sbr.rel (%p272) target = $region16
        $region15: #{tpu_custom_call.1} parent=11 // pred_region
          _
        $region16: #{tpu_custom_call.1} parent=11 // pred_fallthru
          _
        // Predicated region
        $region17: #{tpu_custom_call.1} parent=11 // pred_check
          %p275 = pneg %p84
        $region18: #{tpu_custom_call.1} parent=11 // pred_check_branch
          %277 = sbr.rel (%p275) target = $region20
        $region19: #{tpu_custom_call.1} parent=11 // pred_region
          _
        $region20: #{tpu_custom_call.1} parent=11 // pred_fallthru
          _
        // Predicated region
        $region21: #{tpu_custom_call.1} parent=11 // pred_check
          %p278 = pneg %p105
        $region22: #{tpu_custom_call.1} parent=11 // pred_check_branch
          %280 = sbr.rel (%p278) target = $region24
        $region23: #{tpu_custom_call.1} parent=11 // pred_region
          _
        $region24: #{tpu_custom_call.1} parent=11 // pred_fallthru
          _
        // Predicated region
        $region25: #{tpu_custom_call.1} parent=11 // pred_check
          %p281 = pneg %p126
        $region26: #{tpu_custom_call.1} parent=11 // pred_check_branch
          %283 = sbr.rel (%p281) target = $region28
        $region27: #{tpu_custom_call.1} parent=11 // pred_region
          _
        $region28: #{tpu_custom_call.1} parent=11 // pred_fallthru
          _
        // Predicated region
        $region29: #{tpu_custom_call.1} parent=11 // pred_check
          %p284 = pneg %p147
        $region30: #{tpu_custom_call.1} parent=11 // pred_check_branch
          %286 = sbr.rel (%p284) target = $region32
        $region31: #{tpu_custom_call.1} parent=11 // pred_region
          _
        $region32: #{tpu_custom_call.1} parent=11 // pred_fallthru
          _
        // Predicated region
        $region33: #{tpu_custom_call.1} parent=11 // pred_check
          %p287 = pneg %p168
        $region34: #{tpu_custom_call.1} parent=11 // pred_check_branch
          %289 = sbr.rel (%p287) target = $region36
        $region35: #{tpu_custom_call.1} parent=11 // pred_region
          _
        $region36: #{tpu_custom_call.1} parent=11 // pred_fallthru
          _
        // Predicated region
        $region37: #{tpu_custom_call.1} parent=11 // pred_check
          %p290 = pneg %p189
        $region38: #{tpu_custom_call.1} parent=11 // pred_check_branch
          %292 = sbr.rel (%p290) target = $region40
        $region39: #{tpu_custom_call.1} parent=11 // pred_region
          _
        $region40: #{tpu_custom_call.1} parent=11 // pred_fallthru
          _
        // Predicated region
        $region41: #{tpu_custom_call.1} parent=11 // pred_check
          %p293 = pneg %p210
        $region42: #{tpu_custom_call.1} parent=11 // pred_check_branch
          %295 = sbr.rel (%p293) target = $region44
        $region43: #{tpu_custom_call.1} parent=11 // pred_region
          _
        $region44: #{tpu_custom_call.1} parent=11 // pred_fallthru
          _
        // Predicated region
        $region45: #{tpu_custom_call.1} parent=11 // pred_check
          %p296 = pneg %p231
        $region46: #{tpu_custom_call.1} parent=11 // pred_check_branch
          %298 = sbr.rel (%p296) target = $region48
        $region47: #{tpu_custom_call.1} parent=11 // pred_region
          _
        $region48: #{tpu_custom_call.1} parent=11 // pred_fallthru
          _
      $region12: #{tpu_custom_call.1} parent=5 // pred_fallthru
        _
      %p299 = scmp.lt.s32.totalorder %s16, 4
      // Predicated region
      $region49: #{tpu_custom_call.1} parent=5 // pred_check
        %p300 = pneg %p299
      $region50: #{tpu_custom_call.1} parent=5 // pred_check_branch
        %302 = sbr.rel (%p300) target = $region52
      $region51: #{tpu_custom_call.1} parent=5 // pred_region
        // Predicated region
        $region53: #{tpu_custom_call.1} parent=51 // pred_check
          %p303 = pneg %p36
        $region54: #{tpu_custom_call.1} parent=51 // pred_check_branch
          %305 = sbr.rel (%p303) target = $region56
        $region55: #{tpu_custom_call.1} parent=51 // pred_region
          %s306 = smul.u32 8, %s16
          %s307 = ssub.s32 25, %s306
          %p308 = scmp.lt.s32.totalorder %s307, 8
          %s309 = scalar_select %p308, %s307, 8
          %s310 = smul.u32 128, %s309
          %p311 = scmp.lt.s32.totalorder %s306, 24
          %s312 = scalar_select %p311, %s306, 24
          %s313 = smul.addr %s312, 8
          %s314 = scalar_lea.vmem %s0, %s313
          %s315 = smul.u32 8, %s16
          %s316 = ssub.s32 25, %s315
          %p317 = scmp.lt.s32.totalorder %s316, 8
          %s318 = scalar_select %p317, %s316, 8
          %s319 = smul.u32 128, %s318
        $region56: #{tpu_custom_call.1} parent=51 // pred_fallthru
          _
      $region52: #{tpu_custom_call.1} parent=5 // pred_fallthru
        _
      %p320 = scmp.le.s32.totalorder 1, %s16
      %p321 = scmp.lt.s32.totalorder %s16, 5
      %p322 = pnand %p320, %p321
      %p323 = pneg %p322
      // Predicated region
      $region57: #{tpu_custom_call.1} parent=5 // pred_check
        _
      $region58: #{tpu_custom_call.1} parent=5 // pred_check_branch
        %325 = sbr.rel (%p322) target = $region60
      $region59: #{tpu_custom_call.1} parent=5 // pred_region
        %s326 = ssub.s32 %s16, 1
        %s327 = smul.u32 8, %s21
        %s328 = ssub.s32 25, %s327
        %p329 = scmp.lt.s32.totalorder %s328, 8
        %s330 = scalar_select %p329, %s328, 8
        %s331 = smul.u32 128, %s330
        %p332 = scmp.lt.s32.totalorder %s327, 24
        %s333 = scalar_select %p332, %s327, 24
        %s334 = smul.addr %s333, 8
        %s335 = scalar_lea.vmem %s0, %s334
        %p336 = pneg %p42
        %p337 = pneg %p39
        %p338 = pneg %p63
        %p339 = pneg %p60
        %p340 = pneg %p84
        %p341 = pneg %p81
        %p342 = pneg %p105
        %p343 = pneg %p102
        %p344 = pneg %p126
        %p345 = pneg %p123
        %p346 = pneg %p147
        %p347 = pneg %p144
        %p348 = pneg %p168
        %p349 = pneg %p165
        %p350 = pneg %p189
        %p351 = pneg %p186
        %p352 = pneg %p210
        %p353 = pneg %p207
        %p354 = pneg %p231
        %p355 = pneg %p228
        %p356 = pneg %p257
        %p357 = pneg %p254
        %s358 = sand.u32 %s244, 1
        %s359 = sand.u32 %s244, 1
        %s360 = smul.addr %s359, 64
        %s361 = scalar_lea.vmem [#allocation2], %s360
        %s362 = smul.u32 8, %s21
        %s363 = ssub.s32 25, %s362
        %p364 = scmp.lt.s32.totalorder %s363, 8
        %s365 = scalar_select %p364, %s363, 8
        %s366 = smul.u32 128, %s365
        %p367 = scmp.lt.s32.totalorder %s362, 24
        %s368 = scalar_select %p367, %s362, 24
        %s369 = smul.addr %s368, 8
        %s370 = scalar_lea.vmem %s0, %s369
        %s371 = smul.u32 8, %s21
        %s372 = ssub.s32 25, %s371
        %p373 = scmp.lt.s32.totalorder %s372, 8
        %s374 = scalar_select %p373, %s372, 8
        %s375 = smul.u32 128, %s374
        %s376 = smul.u32 8, %s21
        %s377 = ssub.s32 25, %s376
        %p378 = scmp.lt.s32.totalorder %s377, 8
        %s379 = scalar_select %p378, %s377, 8
        %s380 = smul.u32 128, %s379
        %v382 = vld [vmem:[%s370] sm:$0xff]
        %v383 = vld [vmem:[%s370 + $0x8] sm:$0xff]
        %v384 = vld [vmem:[%s370 + $0x10] sm:$0xff]
        %v385 = vld [vmem:[%s370 + $0x18] sm:$0xff]
        %v386 = vld [vmem:[%s370 + $0x20] sm:$0xff]
        %v387 = vld [vmem:[%s370 + $0x28] sm:$0xff]
        %v388 = vld [vmem:[%s370 + $0x30] sm:$0xff]
        %v389 = vld [vmem:[%s370 + $0x38] sm:$0xff]
        %v390 = vpack.c.bf16 %v383, %v382
        %v391 = vpack.c.bf16 %v385, %v384
        %v392 = vpack.c.bf16 %v387, %v386
        %v393 = vpack.c.bf16 %v389, %v388
        %v394 = vld [vmem:[%s1] sm:$0xf]
        %v395 = vld [vmem:[%s1 + $0x4] sm:$0xf]
        %v396 = vld [vmem:[%s1 + $0x8] sm:$0xf]
        %v397 = vld [vmem:[%s1 + $0xc] sm:$0xf]
        %v398 = vld [vmem:[%s2] sm:$0x1]
        %v400 = vlaneseq
        %v401 = vshrl.u32 %v400, 7
        %v402 = vsub.s32 0, %v401
        %v403 = vrot.slane %v398, %v402
        %v409 = vunpack.c.l.b16 %v394
        %v410 = vunpack.c.l.b16 %v395
        %v411 = vunpack.c.l.b16 %v396
        %v412 = vunpack.c.l.b16 %v397
        %v413 = vpack.c.b16 %v410, %v409
        %v414 = vpack.c.b16 %v412, %v411
        %vm417 = vcmask 261120
        %v419 = vsel %vm417, %v390, 0
        %v422 = vsel %vm417, %v391, 0
        %v425 = vsel %vm417, %v392, 0
        %v428 = vsel %vm417, %v393, 0
        %430 = vmatprep.subr.bf16.mxu0 0
        %431 = vmatpush1.bf16.msra.mxu0 0
        %432 = vmatprep.subr.bf16.mxu0 0
        %433 = vmatpush1.bf16.msra.mxu0 0
        %434 = vmatprep.subr.bf16.mxu0 0
        %435 = vmatpush1.bf16.msra.mxu0 0
        %436 = vmatprep.subr.bf16.mxu0 0
        %437 = vmatpush1.bf16.msra.mxu0 0
        %438 = vmatprep.subr.bf16.mxu0 0
        %439 = vmatpush1.bf16.msra.mxu0 0
        %440 = vmatprep.subr.bf16.mxu0 0
        %441 = vmatpush1.bf16.msra.mxu0 0
        %442 = vmatprep.subr.bf16.mxu0 0
        %443 = vmatpush1.bf16.msra.mxu0 %v414
        %444 = vmatprep.subr.bf16.mxu0 0
        %445 = vmatpush1.bf16.msra.mxu0 %v413
        %446 = vmatprep.subr.bf16.mxu0 0
        %447 = vmatpush2.bf16.msra.mxu0 0
        %448 = vmatprep.subr.bf16.mxu0 0
        %449 = vmatpush2.bf16.msra.mxu0 0
        %450 = vmatprep.subr.bf16.mxu0 0
        %451 = vmatpush2.bf16.msra.mxu0 0
        %452 = vmatprep.subr.bf16.mxu0 0
        %453 = vmatpush2.bf16.msra.mxu0 0
        %454 = vmatprep.subr.bf16.mxu0 0
        %455 = vmatpush2.bf16.msra.mxu0 0
        %456 = vmatprep.subr.bf16.mxu0 0
        %457 = vmatpush2.bf16.msra.mxu0 0
        %458 = vmatprep.subr.bf16.mxu0 0
        %459 = vmatpush2.bf16.msra.mxu0 0
        %460 = vmatprep.subr.bf16.mxu0 0
        %461 = vmatpush2.bf16.msra.mxu0 0
        %462 = vmatprep.mubr.bf16.mxu0 0
        %463 = vmatmul.mubr.bf16.gmra.mxu0 %v419
        %v464 = vpop.f32.mrf.mxu0
        %v465 = vadd.f32 %v403, %v464
        %v466 = vpop.f32.mrf.mxu0
        %v467 = vpop.f32.mrf.mxu0
        %v468 = vadd.f32 %v403, %v467
        %v469 = vpop.f32.mrf.mxu0
        %470 = vmatprep.mubr.bf16.mxu0 0
        %471 = vmatmul.mubr.bf16.gmra.mxu0 %v422
        %v472 = vpop.f32.mrf.mxu0
        %v473 = vadd.f32 %v403, %v472
        %v474 = vpop.f32.mrf.mxu0
        %v475 = vpop.f32.mrf.mxu0
        %v476 = vadd.f32 %v403, %v475
        %v477 = vpop.f32.mrf.mxu0
        %478 = vmatprep.mubr.bf16.mxu0 0
        %479 = vmatmul.mubr.bf16.gmra.mxu0 %v425
        %v480 = vpop.f32.mrf.mxu0
        %v481 = vadd.f32 %v403, %v480
        %v482 = vpop.f32.mrf.mxu0
        %v483 = vpop.f32.mrf.mxu0
        %v484 = vadd.f32 %v403, %v483
        %v485 = vpop.f32.mrf.mxu0
        %486 = vmatprep.mubr.bf16.mxu0 0
        %487 = vmatmul.mubr.bf16.gmra.mxu0 %v428
        %v488 = vpop.f32.mrf.mxu0
        %v489 = vadd.f32 %v403, %v488
        %v490 = vpop.f32.mrf.mxu0
        %v491 = vpop.f32.mrf.mxu0
        %v492 = vadd.f32 %v403, %v491
        %v493 = vpop.f32.mrf.mxu0
        %494 = vdwg.mxu0
        %v495 = vxor.u32 %v465, 2147483648
        %v496 = vxor.u32 %v468, 2147483648
        %v497 = vxor.u32 %v473, 2147483648
        %v498 = vxor.u32 %v476, 2147483648
        %v499 = vxor.u32 %v481, 2147483648
        %v500 = vxor.u32 %v484, 2147483648
        %v501 = vxor.u32 %v489, 2147483648
        %v502 = vxor.u32 %v492, 2147483648
        %v503 = vmul.f32 %v495, 1.442695
        %v504 = vpow.pop %v503
        %v505 = vmul.f32 %v496, 1.442695
        %v506 = vpow.pop %v505
        %v507 = vmul.f32 %v497, 1.442695
        %v508 = vpow.pop %v507
        %v509 = vmul.f32 %v498, 1.442695
        %v510 = vpow.pop %v509
        %v511 = vmul.f32 %v499, 1.442695
        %v512 = vpow.pop %v511
        %v513 = vmul.f32 %v500, 1.442695
        %v514 = vpow.pop %v513
        %v515 = vmul.f32 %v501, 1.442695
        %v516 = vpow.pop %v515
        %v517 = vmul.f32 %v502, 1.442695
        %v518 = vpow.pop %v517
        %v519 = vadd.f32 %v504, 1.0
        %v520 = vadd.f32 %v506, 1.0
        %v521 = vadd.f32 %v508, 1.0
        %v522 = vadd.f32 %v510, 1.0
        %v523 = vadd.f32 %v512, 1.0
        %v524 = vadd.f32 %v514, 1.0
        %v525 = vadd.f32 %v516, 1.0
        %v526 = vadd.f32 %v518, 1.0
        %v527 = vrcp.pop %v519
        %v528 = vmul.f32 1.0, %v527
        %v529 = vrcp.pop %v520
        %v530 = vmul.f32 1.0, %v529
        %v531 = vrcp.pop %v521
        %v532 = vmul.f32 1.0, %v531
        %v533 = vrcp.pop %v522
        %v534 = vmul.f32 1.0, %v533
        %v535 = vrcp.pop %v523
        %v536 = vmul.f32 1.0, %v535
        %v537 = vrcp.pop %v524
        %v538 = vmul.f32 1.0, %v537
        %v539 = vrcp.pop %v525
        %v540 = vmul.f32 1.0, %v539
        %v541 = vrcp.pop %v526
        %v542 = vmul.f32 1.0, %v541
        %v543 = vmul.f32 %v465, %v528
        %v544 = vmul.f32 %v468, %v530
        %v545 = vmul.f32 %v473, %v532
        %v546 = vmul.f32 %v476, %v534
        %v547 = vmul.f32 %v481, %v536
        %v548 = vmul.f32 %v484, %v538
        %v549 = vmul.f32 %v489, %v540
        %v550 = vmul.f32 %v492, %v542
        %v551 = vmul.f32 %v543, %v543
        %v552 = vmul.f32 %v544, %v544
        %v553 = vmul.f32 %v545, %v545
        %v554 = vmul.f32 %v546, %v546
        %v555 = vmul.f32 %v547, %v547
        %v556 = vmul.f32 %v548, %v548
        %v557 = vmul.f32 %v549, %v549
        %v558 = vmul.f32 %v550, %v550
        %vm559 = vcmask 523264
        %v560 = vsel %vm559, %v551, 0.0
        %561 = vadd.xlane.f32.xlu0 %v560
        %v562 = vpop.xlane.xlu0 %561
        %v563 = vsel %vm559, %v552, 0.0
        %564 = vadd.xlane.f32.xlu0 %v563
        %v565 = vpop.xlane.xlu0 %564
        %v566 = vsel %vm559, %v553, 0.0
        %567 = vadd.xlane.f32.xlu0 %v566
        %v568 = vpop.xlane.xlu0 %567
        %v569 = vsel %vm559, %v554, 0.0
        %570 = vadd.xlane.f32.xlu0 %v569
        %v571 = vpop.xlane.xlu0 %570
        %v572 = vsel %vm559, %v555, 0.0
        %573 = vadd.xlane.f32.xlu0 %v572
        %v574 = vpop.xlane.xlu0 %573
        %v575 = vsel %vm559, %v556, 0.0
        %576 = vadd.xlane.f32.xlu0 %v575
        %v577 = vpop.xlane.xlu0 %576
        %v578 = vsel %vm559, %v557, 0.0
        %579 = vadd.xlane.f32.xlu0 %v578
        %v580 = vpop.xlane.xlu0 %579
        %v581 = vsel %vm559, %v558, 0.0
        %582 = vadd.xlane.f32.xlu0 %v581
        %v583 = vpop.xlane.xlu0 %582
        %v584 = vrcp.pop 64.0
        %v585 = vmul.f32 %v562, %v584
        %v586 = vmul.f32 %v565, %v584
        %v587 = vmul.f32 %v568, %v584
        %v588 = vmul.f32 %v571, %v584
        %v589 = vmul.f32 %v574, %v584
        %v590 = vmul.f32 %v577, %v584
        %v591 = vmul.f32 %v580, %v584
        %v592 = vmul.f32 %v583, %v584
        %v593 = vadd.f32 %v585, 1e-06
        %v594 = vadd.f32 %v586, 1e-06
        %v595 = vadd.f32 %v587, 1e-06
        %v596 = vadd.f32 %v588, 1e-06
        %v597 = vadd.f32 %v589, 1e-06
        %v598 = vadd.f32 %v590, 1e-06
        %v599 = vadd.f32 %v591, 1e-06
        %v600 = vadd.f32 %v592, 1e-06
        %v601 = vrsqrt.pop %v593
        %v602 = vrsqrt.pop %v594
        %v603 = vrsqrt.pop %v595
        %v604 = vrsqrt.pop %v596
        %v605 = vrsqrt.pop %v597
        %v606 = vrsqrt.pop %v598
        %v607 = vrsqrt.pop %v599
        %v608 = vrsqrt.pop %v600
        %v609 = vmul.f32 %v543, %v601
        %v610 = vmul.f32 %v544, %v602
        %v611 = vmul.f32 %v545, %v603
        %v612 = vmul.f32 %v546, %v604
        %v613 = vmul.f32 %v547, %v605
        %v614 = vmul.f32 %v548, %v606
        %v615 = vmul.f32 %v549, %v607
        %v616 = vmul.f32 %v550, %v608
        %v617 = vld [vmem:[%s3] sm:$0x1]
        %v619 = vlaneseq
        %v620 = vshrl.u32 %v619, 7
        %v621 = vsub.s32 0, %v620
        %v622 = vrot.slane %v617, %v621
        %v624 = vmul.f32 %v609, %v622
        %v625 = vmul.f32 %v610, %v622
        %v626 = vmul.f32 %v611, %v622
        %v627 = vmul.f32 %v612, %v622
        %v628 = vmul.f32 %v613, %v622
        %v629 = vmul.f32 %v614, %v622
        %v630 = vmul.f32 %v615, %v622
        %v631 = vmul.f32 %v616, %v622
        %v632 = vpack.c.bf16 %v625, %v624
        %v633 = vpack.c.bf16 %v627, %v626
        %v634 = vpack.c.bf16 %v629, %v628
        %v635 = vpack.c.bf16 %v631, %v630
        %v636 = vld [vmem:[%s4] sm:$0xf]
        %v637 = vld [vmem:[%s4 + $0x4] sm:$0xf]
        %v638 = vld [vmem:[%s4 + $0x8] sm:$0xf]
        %v639 = vld [vmem:[%s4 + $0xc] sm:$0xf]
        %v640 = vld [vmem:[%s5] sm:$0x1]
        %v642 = vlaneseq
        %v643 = vshrl.u32 %v642, 7
        %v644 = vsub.s32 0, %v643
        %v645 = vrot.slane %v640, %v644
        %v651 = vunpack.c.l.b16 %v636
        %v652 = vunpack.c.l.b16 %v637
        %v653 = vunpack.c.l.b16 %v638
        %v654 = vunpack.c.l.b16 %v639
        %v655 = vpack.c.b16 %v652, %v651
        %v656 = vpack.c.b16 %v654, %v653
        %v660 = vsel %vm417, %v632, 0
        %v663 = vsel %vm417, %v633, 0
        %v666 = vsel %vm417, %v634, 0
        %v669 = vsel %vm417, %v635, 0
        %671 = vmatprep.subr.bf16.mxu0 0
        %672 = vmatpush1.bf16.msra.mxu0 0
        %673 = vmatprep.subr.bf16.mxu0 0
        %674 = vmatpush1.bf16.msra.mxu0 0
        %675 = vmatprep.subr.bf16.mxu0 0
        %676 = vmatpush1.bf16.msra.mxu0 0
        %677 = vmatprep.subr.bf16.mxu0 0
        %678 = vmatpush1.bf16.msra.mxu0 0
        %679 = vmatprep.subr.bf16.mxu0 0
        %680 = vmatpush1.bf16.msra.mxu0 0
        %681 = vmatprep.subr.bf16.mxu0 0
        %682 = vmatpush1.bf16.msra.mxu0 0
        %683 = vmatprep.subr.bf16.mxu0 0
        %684 = vmatpush1.bf16.msra.mxu0 %v656
        %685 = vmatprep.subr.bf16.mxu0 0
        %686 = vmatpush1.bf16.msra.mxu0 %v655
        %687 = vmatprep.subr.bf16.mxu0 0
        %688 = vmatpush2.bf16.msra.mxu0 0
        %689 = vmatprep.subr.bf16.mxu0 0
        %690 = vmatpush2.bf16.msra.mxu0 0
        %691 = vmatprep.subr.bf16.mxu0 0
        %692 = vmatpush2.bf16.msra.mxu0 0
        %693 = vmatprep.subr.bf16.mxu0 0
        %694 = vmatpush2.bf16.msra.mxu0 0
        %695 = vmatprep.subr.bf16.mxu0 0
        %696 = vmatpush2.bf16.msra.mxu0 0
        %697 = vmatprep.subr.bf16.mxu0 0
        %698 = vmatpush2.bf16.msra.mxu0 0
        %699 = vmatprep.subr.bf16.mxu0 0
        %700 = vmatpush2.bf16.msra.mxu0 0
        %701 = vmatprep.subr.bf16.mxu0 0
        %702 = vmatpush2.bf16.msra.mxu0 0
        %703 = vmatprep.mubr.bf16.mxu0 0
        %704 = vmatmul.mubr.bf16.gmra.mxu0 %v660
        %v705 = vpop.f32.mrf.mxu0
        %v706 = vadd.f32 %v645, %v705
        %v707 = vpop.f32.mrf.mxu0
        %v708 = vpop.f32.mrf.mxu0
        %v709 = vadd.f32 %v645, %v708
        %v710 = vpop.f32.mrf.mxu0
        %711 = vmatprep.mubr.bf16.mxu0 0
        %712 = vmatmul.mubr.bf16.gmra.mxu0 %v663
        %v713 = vpop.f32.mrf.mxu0
        %v714 = vadd.f32 %v645, %v713
        %v715 = vpop.f32.mrf.mxu0
        %v716 = vpop.f32.mrf.mxu0
        %v717 = vadd.f32 %v645, %v716
        %v718 = vpop.f32.mrf.mxu0
        %719 = vmatprep.mubr.bf16.mxu0 0
        %720 = vmatmul.mubr.bf16.gmra.mxu0 %v666
        %v721 = vpop.f32.mrf.mxu0
        %v722 = vadd.f32 %v645, %v721
        %v723 = vpop.f32.mrf.mxu0
        %v724 = vpop.f32.mrf.mxu0
        %v725 = vadd.f32 %v645, %v724
        %v726 = vpop.f32.mrf.mxu0
        %727 = vmatprep.mubr.bf16.mxu0 0
        %728 = vmatmul.mubr.bf16.gmra.mxu0 %v669
        %v729 = vpop.f32.mrf.mxu0
        %v730 = vadd.f32 %v645, %v729
        %v731 = vpop.f32.mrf.mxu0
        %v732 = vpop.f32.mrf.mxu0
        %v733 = vadd.f32 %v645, %v732
        %v734 = vpop.f32.mrf.mxu0
        %735 = vdwg.mxu0
        %v736 = vxor.u32 %v706, 2147483648
        %v737 = vxor.u32 %v709, 2147483648
        %v738 = vxor.u32 %v714, 2147483648
        %v739 = vxor.u32 %v717, 2147483648
        %v740 = vxor.u32 %v722, 2147483648
        %v741 = vxor.u32 %v725, 2147483648
        %v742 = vxor.u32 %v730, 2147483648
        %v743 = vxor.u32 %v733, 2147483648
        %v744 = vmul.f32 %v736, 1.442695
        %v745 = vpow.pop %v744
        %v746 = vmul.f32 %v737, 1.442695
        %v747 = vpow.pop %v746
        %v748 = vmul.f32 %v738, 1.442695
        %v749 = vpow.pop %v748
        %v750 = vmul.f32 %v739, 1.442695
        %v751 = vpow.pop %v750
        %v752 = vmul.f32 %v740, 1.442695
        %v753 = vpow.pop %v752
        %v754 = vmul.f32 %v741, 1.442695
        %v755 = vpow.pop %v754
        %v756 = vmul.f32 %v742, 1.442695
        %v757 = vpow.pop %v756
        %v758 = vmul.f32 %v743, 1.442695
        %v759 = vpow.pop %v758
        %v760 = vadd.f32 %v745, 1.0
        %v761 = vadd.f32 %v747, 1.0
        %v762 = vadd.f32 %v749, 1.0
        %v763 = vadd.f32 %v751, 1.0
        %v764 = vadd.f32 %v753, 1.0
        %v765 = vadd.f32 %v755, 1.0
        %v766 = vadd.f32 %v757, 1.0
        %v767 = vadd.f32 %v759, 1.0
        %v768 = vrcp.pop %v760
        %v769 = vmul.f32 1.0, %v768
        %v770 = vrcp.pop %v761
        %v771 = vmul.f32 1.0, %v770
        %v772 = vrcp.pop %v762
        %v773 = vmul.f32 1.0, %v772
        %v774 = vrcp.pop %v763
        %v775 = vmul.f32 1.0, %v774
        %v776 = vrcp.pop %v764
        %v777 = vmul.f32 1.0, %v776
        %v778 = vrcp.pop %v765
        %v779 = vmul.f32 1.0, %v778
        %v780 = vrcp.pop %v766
        %v781 = vmul.f32 1.0, %v780
        %v782 = vrcp.pop %v767
        %v783 = vmul.f32 1.0, %v782
        %v784 = vmul.f32 %v706, %v769
        %v785 = vmul.f32 %v709, %v771
        %v786 = vmul.f32 %v714, %v773
        %v787 = vmul.f32 %v717, %v775
        %v788 = vmul.f32 %v722, %v777
        %v789 = vmul.f32 %v725, %v779
        %v790 = vmul.f32 %v730, %v781
        %v791 = vmul.f32 %v733, %v783
        %v792 = vmul.f32 %v784, %v784
        %v793 = vmul.f32 %v785, %v785
        %v794 = vmul.f32 %v786, %v786
        %v795 = vmul.f32 %v787, %v787
        %v796 = vmul.f32 %v788, %v788
        %v797 = vmul.f32 %v789, %v789
        %v798 = vmul.f32 %v790, %v790
        %v799 = vmul.f32 %v791, %v791
        %v800 = vsel %vm417, %v792, 0.0
        %801 = vadd.xlane.f32.xlu0 %v800
        %v802 = vpop.xlane.xlu0 %801
        %v803 = vsel %vm417, %v793, 0.0
        %804 = vadd.xlane.f32.xlu0 %v803
        %v805 = vpop.xlane.xlu0 %804
        %v806 = vsel %vm417, %v794, 0.0
        %807 = vadd.xlane.f32.xlu0 %v806
        %v808 = vpop.xlane.xlu0 %807
        %v809 = vsel %vm417, %v795, 0.0
        %810 = vadd.xlane.f32.xlu0 %v809
        %v811 = vpop.xlane.xlu0 %810
        %v812 = vsel %vm417, %v796, 0.0
        %813 = vadd.xlane.f32.xlu0 %v812
        %v814 = vpop.xlane.xlu0 %813
        %v815 = vsel %vm417, %v797, 0.0
        %816 = vadd.xlane.f32.xlu0 %v815
        %v817 = vpop.xlane.xlu0 %816
        %v818 = vsel %vm417, %v798, 0.0
        %819 = vadd.xlane.f32.xlu0 %v818
        %v820 = vpop.xlane.xlu0 %819
        %v821 = vsel %vm417, %v799, 0.0
        %822 = vadd.xlane.f32.xlu0 %v821
        %v823 = vpop.xlane.xlu0 %822
        %v824 = vrcp.pop 32.0
        %v825 = vmul.f32 %v802, %v824
        %v826 = vmul.f32 %v805, %v824
        %v827 = vmul.f32 %v808, %v824
        %v828 = vmul.f32 %v811, %v824
        %v829 = vmul.f32 %v814, %v824
        %v830 = vmul.f32 %v817, %v824
        %v831 = vmul.f32 %v820, %v824
        %v832 = vmul.f32 %v823, %v824
        %v833 = vadd.f32 %v825, 1e-06
        %v834 = vadd.f32 %v826, 1e-06
        %v835 = vadd.f32 %v827, 1e-06
        %v836 = vadd.f32 %v828, 1e-06
        %v837 = vadd.f32 %v829, 1e-06
        %v838 = vadd.f32 %v830, 1e-06
        %v839 = vadd.f32 %v831, 1e-06
        %v840 = vadd.f32 %v832, 1e-06
        %v841 = vrsqrt.pop %v833
        %v842 = vrsqrt.pop %v834
        %v843 = vrsqrt.pop %v835
        %v844 = vrsqrt.pop %v836
        %v845 = vrsqrt.pop %v837
        %v846 = vrsqrt.pop %v838
        %v847 = vrsqrt.pop %v839
        %v848 = vrsqrt.pop %v840
        %v849 = vmul.f32 %v784, %v841
        %v850 = vmul.f32 %v785, %v842
        %v851 = vmul.f32 %v786, %v843
        %v852 = vmul.f32 %v787, %v844
        %v853 = vmul.f32 %v788, %v845
        %v854 = vmul.f32 %v789, %v846
        %v855 = vmul.f32 %v790, %v847
        %v856 = vmul.f32 %v791, %v848
        %v857 = vld [vmem:[%s6] sm:$0x1]
        %v859 = vlaneseq
        %v860 = vshrl.u32 %v859, 7
        %v861 = vsub.s32 0, %v860
        %v862 = vrot.slane %v857, %v861
        %v864 = vmul.f32 %v849, %v862
        %v865 = vmul.f32 %v850, %v862
        %v866 = vmul.f32 %v851, %v862
        %v867 = vmul.f32 %v852, %v862
        %v868 = vmul.f32 %v853, %v862
        %v869 = vmul.f32 %v854, %v862
        %v870 = vmul.f32 %v855, %v862
        %v871 = vmul.f32 %v856, %v862
        %v872 = vpack.c.bf16 %v865, %v864
        %v873 = vpack.c.bf16 %v867, %v866
        %v874 = vpack.c.bf16 %v869, %v868
        %v875 = vpack.c.bf16 %v871, %v870
        %v876 = vld [vmem:[%s7] sm:$0xf]
        %v877 = vld [vmem:[%s7 + $0x4] sm:$0xf]
        %v878 = vld [vmem:[%s8] sm:$0x1]
        %v880 = vlaneseq
        %v881 = vshrl.u32 %v880, 7
        %v882 = vsub.s32 0, %v881
        %v883 = vrot.slane %v878, %v882
        %v887 = vunpack.c.l.b16 %v876
        %v888 = vunpack.c.l.b16 %v877
        %v889 = vpack.c.b16 %v888, %v887
        %vm891 = vcmask 130048
        %v893 = vsel %vm891, %v872, 0
        %v896 = vsel %vm891, %v873, 0
        %v899 = vsel %vm891, %v874, 0
        %v902 = vsel %vm891, %v875, 0
        %904 = vmatprep.subr.bf16.mxu0 0
        %905 = vmatpush1.bf16.msra.mxu0 0
        %906 = vmatprep.subr.bf16.mxu0 0
        %907 = vmatpush1.bf16.msra.mxu0 0
        %908 = vmatprep.subr.bf16.mxu0 0
        %909 = vmatpush1.bf16.msra.mxu0 0
        %910 = vmatprep.subr.bf16.mxu0 0
        %911 = vmatpush1.bf16.msra.mxu0 0
        %912 = vmatprep.subr.bf16.mxu0 0
        %913 = vmatpush1.bf16.msra.mxu0 0
        %914 = vmatprep.subr.bf16.mxu0 0
        %915 = vmatpush1.bf16.msra.mxu0 0
        %916 = vmatprep.subr.bf16.mxu0 0
        %917 = vmatpush1.bf16.msra.mxu0 0
        %918 = vmatprep.subr.bf16.mxu0 0
        %919 = vmatpush1.bf16.msra.mxu0 %v889
        %920 = vmatprep.subr.bf16.mxu0 0
        %921 = vmatpush2.bf16.msra.mxu0 0
        %922 = vmatprep.subr.bf16.mxu0 0
        %923 = vmatpush2.bf16.msra.mxu0 0
        %924 = vmatprep.subr.bf16.mxu0 0
        %925 = vmatpush2.bf16.msra.mxu0 0
        %926 = vmatprep.subr.bf16.mxu0 0
        %927 = vmatpush2.bf16.msra.mxu0 0
        %928 = vmatprep.subr.bf16.mxu0 0
        %929 = vmatpush2.bf16.msra.mxu0 0
        %930 = vmatprep.subr.bf16.mxu0 0
        %931 = vmatpush2.bf16.msra.mxu0 0
        %932 = vmatprep.subr.bf16.mxu0 0
        %933 = vmatpush2.bf16.msra.mxu0 0
        %934 = vmatprep.subr.bf16.mxu0 0
        %935 = vmatpush2.bf16.msra.mxu0 0
        %936 = vmatprep.mubr.bf16.mxu0 0
        %937 = vmatmul.mubr.bf16.gmra.mxu0 %v893
        %v938 = vpop.f32.mrf.mxu0
        %v939 = vadd.f32 %v883, %v938
        %v940 = vpop.f32.mrf.mxu0
        %v941 = vpop.f32.mrf.mxu0
        %v942 = vadd.f32 %v883, %v941
        %v943 = vpop.f32.mrf.mxu0
        %944 = vmatprep.mubr.bf16.mxu0 0
        %945 = vmatmul.mubr.bf16.gmra.mxu0 %v896
        %v946 = vpop.f32.mrf.mxu0
        %v947 = vadd.f32 %v883, %v946
        %v948 = vpop.f32.mrf.mxu0
        %v949 = vpop.f32.mrf.mxu0
        %v950 = vadd.f32 %v883, %v949
        %v951 = vpop.f32.mrf.mxu0
        %952 = vmatprep.mubr.bf16.mxu0 0
        %953 = vmatmul.mubr.bf16.gmra.mxu0 %v899
        %v954 = vpop.f32.mrf.mxu0
        %v955 = vadd.f32 %v883, %v954
        %v956 = vpop.f32.mrf.mxu0
        %v957 = vpop.f32.mrf.mxu0
        %v958 = vadd.f32 %v883, %v957
        %v959 = vpop.f32.mrf.mxu0
        %960 = vmatprep.mubr.bf16.mxu0 0
        %961 = vmatmul.mubr.bf16.gmra.mxu0 %v902
        %v962 = vpop.f32.mrf.mxu0
        %v963 = vadd.f32 %v883, %v962
        %v964 = vpop.f32.mrf.mxu0
        %v965 = vpop.f32.mrf.mxu0
        %v966 = vadd.f32 %v883, %v965
        %v967 = vpop.f32.mrf.mxu0
        %968 = vdwg.mxu0
        %v969 = vxor.u32 %v939, 2147483648
        %v970 = vxor.u32 %v942, 2147483648
        %v971 = vxor.u32 %v947, 2147483648
        %v972 = vxor.u32 %v950, 2147483648
        %v973 = vxor.u32 %v955, 2147483648
        %v974 = vxor.u32 %v958, 2147483648
        %v975 = vxor.u32 %v963, 2147483648
        %v976 = vxor.u32 %v966, 2147483648
        %v977 = vmul.f32 %v969, 1.442695
        %v978 = vpow.pop %v977
        %v979 = vmul.f32 %v970, 1.442695
        %v980 = vpow.pop %v979
        %v981 = vmul.f32 %v971, 1.442695
        %v982 = vpow.pop %v981
        %v983 = vmul.f32 %v972, 1.442695
        %v984 = vpow.pop %v983
        %v985 = vmul.f32 %v973, 1.442695
        %v986 = vpow.pop %v985
        %v987 = vmul.f32 %v974, 1.442695
        %v988 = vpow.pop %v987
        %v989 = vmul.f32 %v975, 1.442695
        %v990 = vpow.pop %v989
        %v991 = vmul.f32 %v976, 1.442695
        %v992 = vpow.pop %v991
        %v993 = vadd.f32 %v978, 1.0
        %v994 = vadd.f32 %v980, 1.0
        %v995 = vadd.f32 %v982, 1.0
        %v996 = vadd.f32 %v984, 1.0
        %v997 = vadd.f32 %v986, 1.0
        %v998 = vadd.f32 %v988, 1.0
        %v999 = vadd.f32 %v990, 1.0
        %v1000 = vadd.f32 %v992, 1.0
        %v1001 = vrcp.pop %v993
        %v1002 = vmul.f32 1.0, %v1001
        %v1003 = vrcp.pop %v994
        %v1004 = vmul.f32 1.0, %v1003
        %v1005 = vrcp.pop %v995
        %v1006 = vmul.f32 1.0, %v1005
        %v1007 = vrcp.pop %v996
        %v1008 = vmul.f32 1.0, %v1007
        %v1009 = vrcp.pop %v997
        %v1010 = vmul.f32 1.0, %v1009
        %v1011 = vrcp.pop %v998
        %v1012 = vmul.f32 1.0, %v1011
        %v1013 = vrcp.pop %v999
        %v1014 = vmul.f32 1.0, %v1013
        %v1015 = vrcp.pop %v1000
        %v1016 = vmul.f32 1.0, %v1015
        %v1017 = vmul.f32 %v939, %v1002
        %v1018 = vmul.f32 %v942, %v1004
        %v1019 = vmul.f32 %v947, %v1006
        %v1020 = vmul.f32 %v950, %v1008
        %v1021 = vmul.f32 %v955, %v1010
        %v1022 = vmul.f32 %v958, %v1012
        %v1023 = vmul.f32 %v963, %v1014
        %v1024 = vmul.f32 %v966, %v1016
        %v1025 = vmul.f32 %v1017, %v1017
        %v1026 = vmul.f32 %v1018, %v1018
        %v1027 = vmul.f32 %v1019, %v1019
        %v1028 = vmul.f32 %v1020, %v1020
        %v1029 = vmul.f32 %v1021, %v1021
        %v1030 = vmul.f32 %v1022, %v1022
        %v1031 = vmul.f32 %v1023, %v1023
        %v1032 = vmul.f32 %v1024, %v1024
        %v1033 = vsel %vm891, %v1025, 0.0
        %1034 = vadd.xlane.f32.xlu0 %v1033
        %v1035 = vpop.xlane.xlu0 %1034
        %v1036 = vsel %vm891, %v1026, 0.0
        %1037 = vadd.xlane.f32.xlu0 %v1036
        %v1038 = vpop.xlane.xlu0 %1037
        %v1039 = vsel %vm891, %v1027, 0.0
        %1040 = vadd.xlane.f32.xlu0 %v1039
        %v1041 = vpop.xlane.xlu0 %1040
        %v1042 = vsel %vm891, %v1028, 0.0
        %1043 = vadd.xlane.f32.xlu0 %v1042
        %v1044 = vpop.xlane.xlu0 %1043
        %v1045 = vsel %vm891, %v1029, 0.0
        %1046 = vadd.xlane.f32.xlu0 %v1045
        %v1047 = vpop.xlane.xlu0 %1046
        %v1048 = vsel %vm891, %v1030, 0.0
        %1049 = vadd.xlane.f32.xlu0 %v1048
        %v1050 = vpop.xlane.xlu0 %1049
        %v1051 = vsel %vm891, %v1031, 0.0
        %1052 = vadd.xlane.f32.xlu0 %v1051
        %v1053 = vpop.xlane.xlu0 %1052
        %v1054 = vsel %vm891, %v1032, 0.0
        %1055 = vadd.xlane.f32.xlu0 %v1054
        %v1056 = vpop.xlane.xlu0 %1055
        %v1057 = vrcp.pop 16.0
        %v1058 = vmul.f32 %v1035, %v1057
        %v1059 = vmul.f32 %v1038, %v1057
        %v1060 = vmul.f32 %v1041, %v1057
        %v1061 = vmul.f32 %v1044, %v1057
        %v1062 = vmul.f32 %v1047, %v1057
        %v1063 = vmul.f32 %v1050, %v1057
        %v1064 = vmul.f32 %v1053, %v1057
        %v1065 = vmul.f32 %v1056, %v1057
        %v1066 = vadd.f32 %v1058, 1e-06
        %v1067 = vadd.f32 %v1059, 1e-06
        %v1068 = vadd.f32 %v1060, 1e-06
        %v1069 = vadd.f32 %v1061, 1e-06
        %v1070 = vadd.f32 %v1062, 1e-06
        %v1071 = vadd.f32 %v1063, 1e-06
        %v1072 = vadd.f32 %v1064, 1e-06
        %v1073 = vadd.f32 %v1065, 1e-06
        %v1074 = vrsqrt.pop %v1066
        %v1075 = vrsqrt.pop %v1067
        %v1076 = vrsqrt.pop %v1068
        %v1077 = vrsqrt.pop %v1069
        %v1078 = vrsqrt.pop %v1070
        %v1079 = vrsqrt.pop %v1071
        %v1080 = vrsqrt.pop %v1072
        %v1081 = vrsqrt.pop %v1073
        %v1082 = vmul.f32 %v1017, %v1074
        %v1083 = vmul.f32 %v1018, %v1075
        %v1084 = vmul.f32 %v1019, %v1076
        %v1085 = vmul.f32 %v1020, %v1077
        %v1086 = vmul.f32 %v1021, %v1078
        %v1087 = vmul.f32 %v1022, %v1079
        %v1088 = vmul.f32 %v1023, %v1080
        %v1089 = vmul.f32 %v1024, %v1081
        %v1090 = vld [vmem:[%s9] sm:$0x1]
        %v1092 = vlaneseq
        %v1093 = vshrl.u32 %v1092, 7
        %v1094 = vsub.s32 0, %v1093
        %v1095 = vrot.slane %v1090, %v1094
        %v1097 = vmul.f32 %v1082, %v1095
        %v1098 = vmul.f32 %v1083, %v1095
        %v1099 = vmul.f32 %v1084, %v1095
        %v1100 = vmul.f32 %v1085, %v1095
        %v1101 = vmul.f32 %v1086, %v1095
        %v1102 = vmul.f32 %v1087, %v1095
        %v1103 = vmul.f32 %v1088, %v1095
        %v1104 = vmul.f32 %v1089, %v1095
        %1113 = vrot.lane.b32.xlu0 %v624, 96
        %v1114 = vpop.permute.xlu0 %1113
        %1115 = vrot.lane.b32.xlu0 %v625, 96
        %v1116 = vpop.permute.xlu0 %1115
        %1117 = vrot.lane.b32.xlu0 %v626, 96
        %v1118 = vpop.permute.xlu0 %1117
        %1119 = vrot.lane.b32.xlu0 %v627, 96
        %v1120 = vpop.permute.xlu0 %1119
        %1121 = vrot.lane.b32.xlu0 %v628, 96
        %v1122 = vpop.permute.xlu0 %1121
        %1123 = vrot.lane.b32.xlu0 %v629, 96
        %v1124 = vpop.permute.xlu0 %1123
        %1125 = vrot.lane.b32.xlu0 %v630, 96
        %v1126 = vpop.permute.xlu0 %1125
        %1127 = vrot.lane.b32.xlu0 %v631, 96
        %v1128 = vpop.permute.xlu0 %1127
        %1145 = vrot.lane.b32.xlu0 %v864, 16
        %v1146 = vpop.permute.xlu0 %1145
        %1147 = vrot.lane.b32.xlu0 %v865, 16
        %v1148 = vpop.permute.xlu0 %1147
        %1149 = vrot.lane.b32.xlu0 %v866, 16
        %v1150 = vpop.permute.xlu0 %1149
        %1151 = vrot.lane.b32.xlu0 %v867, 16
        %v1152 = vpop.permute.xlu0 %1151
        %1153 = vrot.lane.b32.xlu0 %v868, 16
        %v1154 = vpop.permute.xlu0 %1153
        %1155 = vrot.lane.b32.xlu0 %v869, 16
        %v1156 = vpop.permute.xlu0 %1155
        %1157 = vrot.lane.b32.xlu0 %v870, 16
        %v1158 = vpop.permute.xlu0 %1157
        %1159 = vrot.lane.b32.xlu0 %v871, 16
        %v1160 = vpop.permute.xlu0 %1159
        %1177 = vrot.lane.b32.xlu0 %v1097, 48
        %v1178 = vpop.permute.xlu0 %1177
        %1179 = vrot.lane.b32.xlu0 %v1098, 48
        %v1180 = vpop.permute.xlu0 %1179
        %1181 = vrot.lane.b32.xlu0 %v1099, 48
        %v1182 = vpop.permute.xlu0 %1181
        %1183 = vrot.lane.b32.xlu0 %v1100, 48
        %v1184 = vpop.permute.xlu0 %1183
        %1185 = vrot.lane.b32.xlu0 %v1101, 48
        %v1186 = vpop.permute.xlu0 %1185
        %1187 = vrot.lane.b32.xlu0 %v1102, 48
        %v1188 = vpop.permute.xlu0 %1187
        %1189 = vrot.lane.b32.xlu0 %v1103, 48
        %v1190 = vpop.permute.xlu0 %1189
        %1191 = vrot.lane.b32.xlu0 %v1104, 48
        %v1192 = vpop.permute.xlu0 %1191
        %v1201 = vsel %vm417, %v1114, %v1146
        %v1202 = vsel %vm417, %v1116, %v1148
        %v1203 = vsel %vm417, %v1118, %v1150
        %v1204 = vsel %vm417, %v1120, %v1152
        %v1205 = vsel %vm417, %v1122, %v1154
        %v1206 = vsel %vm417, %v1124, %v1156
        %v1207 = vsel %vm417, %v1126, %v1158
        %v1208 = vsel %vm417, %v1128, %v1160
        %vm1209 = vcmask 392192
        %v1210 = vsel %vm1209, %v1201, %v1178
        %v1211 = vsel %vm1209, %v1202, %v1180
        %v1212 = vsel %vm1209, %v1203, %v1182
        %v1213 = vsel %vm1209, %v1204, %v1184
        %v1214 = vsel %vm1209, %v1205, %v1186
        %v1215 = vsel %vm1209, %v1206, %v1188
        %v1216 = vsel %vm1209, %v1207, %v1190
        %v1217 = vsel %vm1209, %v1208, %v1192
        %1218 = vst.msk [vmem:[%s361] sm:$0xff] %vm559, %v1210
        %1219 = vst.msk [vmem:[%s361 + $0x8] sm:$0xff] %vm559, %v1211
        %1220 = vst.msk [vmem:[%s361 + $0x10] sm:$0xff] %vm559, %v1212
        %1221 = vst.msk [vmem:[%s361 + $0x18] sm:$0xff] %vm559, %v1213
        %1222 = vst.msk [vmem:[%s361 + $0x20] sm:$0xff] %vm559, %v1214
        %1223 = vst.msk [vmem:[%s361 + $0x28] sm:$0xff] %vm559, %v1215
        %1224 = vst.msk [vmem:[%s361 + $0x30] sm:$0xff] %vm559, %v1216
        %1225 = vst.msk [vmem:[%s361 + $0x38] sm:$0xff] %vm559, %v1217
        %s1226 = sand.u32 %s244, 1
        %s1227 = sand.u32 %s244, 1
        %s1228 = smul.addr %s1227, 64
        %s1229 = scalar_lea.vmem [#allocation2], %s1228
        // Predicated region
        $region61: #{tpu_custom_call.1} parent=59 // pred_check
          %p1230 = pneg %p254
        $region62: #{tpu_custom_call.1} parent=59 // pred_check_branch
          %1232 = sbr.rel (%p1230) target = $region64
        $region63: #{tpu_custom_call.1} parent=59 // pred_region
          %s1233 = smul.u32 8, %s21
          %s1234 = ssub.s32 25, %s1233
          %p1235 = scmp.lt.s32.totalorder %s1234, 8
          %s1236 = scalar_select %p1235, %s1234, 8
          %s1237 = smul.u32 128, %s1236
          %p1238 = scmp.ne.s32.totalorder 0, %s1237
          %s1239 = smul.addr %s1233, 8
          %s1240 = scalar_lea.vmem %s10, %s1239
          // Predicated region
          $region65: #{tpu_custom_call.1} parent=63 // pred_check
            %p1241 = pneg %p1238
          $region66: #{tpu_custom_call.1} parent=63 // pred_check_branch
            %1243 = sbr.rel (%p1241) target = $region68
          $region67: #{tpu_custom_call.1} parent=63 // pred_region
            // Predicated region
            $region69: #{tpu_custom_call.1} parent=67 // pred_check
              _
            $region70: #{tpu_custom_call.1} parent=67 // pred_check_branch
              %1245 = sbr.rel (0) target = $region72
            $region71: #{tpu_custom_call.1} parent=67 // pred_region
              // Predicated region
              $region91: #{tpu_custom_call.1} parent=71 // pred_check
                _
              $region92: #{tpu_custom_call.1} parent=71 // pred_check_branch
                %1309 = sbr.rel (0) target = $region94
              $region93: #{tpu_custom_call.1} parent=71 // pred_region
                %s1310 = sshrl.u32 %s1236, 3
                // While loop
                $region95: #{tpu_custom_call.1} parent=93 // loop_pre_header
                  _
                $region96: #{tpu_custom_call.1} parent=93 // loop_header
                  %s1312 = sphi 0, %s1314
                  %p1313 = scmp.ge.s32.totalorder %s1312, %s1310
                  %s1317 = sphi 0, %s1338
                  %s1318 = sphi %s1229, %s1341
                  %s1319 = sphi %s1240, %s1342
                $region97: #{tpu_custom_call.1} parent=93 // loop_header_branch
                  %1316 = sbr.rel (%p1313) target = $region101
                $region98: #{tpu_custom_call.1} parent=93 // loop_body
                  %v1320 = vld [vmem:[%s1318] sm:$0xff]
                  %1321 = vst [vmem:[%s1319] sm:$0xff] %v1320
                  %v1322 = vld [vmem:[%s1318 + $0x8] sm:$0xff]
                  %1323 = vst [vmem:[%s1319 + $0x8] sm:$0xff] %v1322
                  %v1324 = vld [vmem:[%s1318 + $0x10] sm:$0xff]
                  %1325 = vst [vmem:[%s1319 + $0x10] sm:$0xff] %v1324
                  %v1326 = vld [vmem:[%s1318 + $0x18] sm:$0xff]
                  %1327 = vst [vmem:[%s1319 + $0x18] sm:$0xff] %v1326
                  %v1328 = vld [vmem:[%s1318 + $0x20] sm:$0xff]
                  %1329 = vst [vmem:[%s1319 + $0x20] sm:$0xff] %v1328
                  %v1330 = vld [vmem:[%s1318 + $0x28] sm:$0xff]
                  %1331 = vst [vmem:[%s1319 + $0x28] sm:$0xff] %v1330
                  %v1332 = vld [vmem:[%s1318 + $0x30] sm:$0xff]
                  %1333 = vst [vmem:[%s1319 + $0x30] sm:$0xff] %v1332
                  %v1334 = vld [vmem:[%s1318 + $0x38] sm:$0xff]
                  %1335 = vst [vmem:[%s1319 + $0x38] sm:$0xff] %v1334
                  %s1336 = sadd.s32 1, %s1317
                  %p1337 = scmp.ge.s32.totalorder %s1336, %s1310
                  %s1338 = scalar_select %p1337, 0, %s1336
                  %s1339 = smul.u32 %s1338, 64
                  %s1340 = smul.u32 %s1338, 64
                  %s1341 = scalar_lea.vmem %s1229, %s1339 [#allocation2]
                  %s1342 = scalar_lea.vmem %s1240, %s1340
                $region99: #{tpu_custom_call.1} parent=93 // loop_footer
                  %s1314 = sadd.s32 %s1312, 1
                $region100: #{tpu_custom_call.1} parent=93 // loop_footer_branch
                  %1311 = sbr.rel target = $region96
                $region101: #{tpu_custom_call.1} parent=93 // loop_exit
                  _
                %s1343 = sshrl.u32 %s1236, 3
                %s1344 = sand.u32 %s1236, 7
                %s1345 = smul.u32 %s1343, 8
                %s1346 = smul.u32 8, %s1345
                %s1347 = scalar_lea.vmem %s1229, %s1346 [#allocation2]
                %s1348 = smul.u32 8, %s1345
                %s1349 = scalar_lea.vmem %s1240, %s1348
                // While loop
                $region102: #{tpu_custom_call.1} parent=93 // loop_pre_header
                  _
                $region103: #{tpu_custom_call.1} parent=93 // loop_header
                  %s1351 = sphi 0, %s1353
                  %p1352 = scmp.ge.s32.totalorder %s1351, %s1344
                  %s1356 = sphi 0, %s1363
                  %s1357 = sphi %s1347, %s1366
                  %s1358 = sphi %s1349, %s1367
                $region104: #{tpu_custom_call.1} parent=93 // loop_header_branch
                  %1355 = sbr.rel (%p1352) target = $region108
                $region105: #{tpu_custom_call.1} parent=93 // loop_body
                  %v1359 = vld [vmem:[%s1357] sm:$0xff]
                  %1360 = vst [vmem:[%s1358] sm:$0xff] %v1359
                  %s1361 = sadd.s32 1, %s1356
                  %p1362 = scmp.ge.s32.totalorder %s1361, %s1344
                  %s1363 = scalar_select %p1362, 0, %s1361
                  %s1364 = smul.u32 %s1363, 8
                  %s1365 = smul.u32 %s1363, 8
                  %s1366 = scalar_lea.vmem %s1347, %s1364 [#allocation2]
                  %s1367 = scalar_lea.vmem %s1349, %s1365
                $region106: #{tpu_custom_call.1} parent=93 // loop_footer
                  %s1353 = sadd.s32 %s1351, 1
                $region107: #{tpu_custom_call.1} parent=93 // loop_footer_branch
                  %1350 = sbr.rel target = $region103
                $region108: #{tpu_custom_call.1} parent=93 // loop_exit
                  _
              $region94: #{tpu_custom_call.1} parent=71 // pred_fallthru
                _
              // Predicated region
              $region109: #{tpu_custom_call.1} parent=71 // pred_check
                _
              $region110: #{tpu_custom_call.1} parent=71 // pred_check_branch
                %1369 = sbr.rel target = $region112
              $region111: #{tpu_custom_call.1} parent=71 // pred_region
                _
              $region112: #{tpu_custom_call.1} parent=71 // pred_fallthru
                _
            $region72: #{tpu_custom_call.1} parent=67 // pred_fallthru
              _
            // Predicated region
            $region73: #{tpu_custom_call.1} parent=67 // pred_check
              _
            $region74: #{tpu_custom_call.1} parent=67 // pred_check_branch
              %1247 = sbr.rel target = $region76
            $region75: #{tpu_custom_call.1} parent=67 // pred_region
              %s1249 = ssub.s32 256, 1
              %s1250 = sshrl.u32 %s1236, 3
              // While loop
              $region77: #{tpu_custom_call.1} parent=75 // loop_pre_header
                _
              $region78: #{tpu_custom_call.1} parent=75 // loop_header
                %s1252 = sphi 0, %s1254
                %p1253 = scmp.ge.s32.totalorder %s1252, %s1250
                %s1257 = sphi 0, %s1278
                %s1258 = sphi %s1229, %s1281
                %s1259 = sphi %s1240, %s1282
              $region79: #{tpu_custom_call.1} parent=75 // loop_header_branch
                %1256 = sbr.rel (%p1253) target = $region83
              $region80: #{tpu_custom_call.1} parent=75 // loop_body
                %v1260 = vld [vmem:[%s1258] sm:%s1249]
                %1261 = vst [vmem:[%s1259] sm:%s1249] %v1260
                %v1262 = vld [vmem:[%s1258 + $0x8] sm:%s1249]
                %1263 = vst [vmem:[%s1259 + $0x8] sm:%s1249] %v1262
                %v1264 = vld [vmem:[%s1258 + $0x10] sm:%s1249]
                %1265 = vst [vmem:[%s1259 + $0x10] sm:%s1249] %v1264
                %v1266 = vld [vmem:[%s1258 + $0x18] sm:%s1249]
                %1267 = vst [vmem:[%s1259 + $0x18] sm:%s1249] %v1266
                %v1268 = vld [vmem:[%s1258 + $0x20] sm:%s1249]
                %1269 = vst [vmem:[%s1259 + $0x20] sm:%s1249] %v1268
                %v1270 = vld [vmem:[%s1258 + $0x28] sm:%s1249]
                %1271 = vst [vmem:[%s1259 + $0x28] sm:%s1249] %v1270
                %v1272 = vld [vmem:[%s1258 + $0x30] sm:%s1249]
                %1273 = vst [vmem:[%s1259 + $0x30] sm:%s1249] %v1272
                %v1274 = vld [vmem:[%s1258 + $0x38] sm:%s1249]
                %1275 = vst [vmem:[%s1259 + $0x38] sm:%s1249] %v1274
                %s1276 = sadd.s32 1, %s1257
                %p1277 = scmp.ge.s32.totalorder %s1276, %s1250
                %s1278 = scalar_select %p1277, 0, %s1276
                %s1279 = smul.u32 %s1278, 64
                %s1280 = smul.u32 %s1278, 64
                %s1281 = scalar_lea.vmem %s1229, %s1279 [#allocation2]
                %s1282 = scalar_lea.vmem %s1240, %s1280
              $region81: #{tpu_custom_call.1} parent=75 // loop_footer
                %s1254 = sadd.s32 %s1252, 1
              $region82: #{tpu_custom_call.1} parent=75 // loop_footer_branch
                %1251 = sbr.rel target = $region78
              $region83: #{tpu_custom_call.1} parent=75 // loop_exit
                _
              %s1283 = sshrl.u32 %s1236, 3
              %s1284 = sand.u32 %s1236, 7
              %s1285 = smul.u32 %s1283, 8
              %s1286 = smul.u32 8, %s1285
              %s1287 = scalar_lea.vmem %s1229, %s1286 [#allocation2]
              %s1288 = smul.u32 8, %s1285
              %s1289 = scalar_lea.vmem %s1240, %s1288
              // While loop
              $region84: #{tpu_custom_call.1} parent=75 // loop_pre_header
                _
              $region85: #{tpu_custom_call.1} parent=75 // loop_header
                %s1291 = sphi 0, %s1293
                %p1292 = scmp.ge.s32.totalorder %s1291, %s1284
                %s1296 = sphi 0, %s1303
                %s1297 = sphi %s1287, %s1306
                %s1298 = sphi %s1289, %s1307
              $region86: #{tpu_custom_call.1} parent=75 // loop_header_branch
                %1295 = sbr.rel (%p1292) target = $region90
              $region87: #{tpu_custom_call.1} parent=75 // loop_body
                %v1299 = vld [vmem:[%s1297] sm:%s1249]
                %1300 = vst [vmem:[%s1298] sm:%s1249] %v1299
                %s1301 = sadd.s32 1, %s1296
                %p1302 = scmp.ge.s32.totalorder %s1301, %s1284
                %s1303 = scalar_select %p1302, 0, %s1301
                %s1304 = smul.u32 %s1303, 8
                %s1305 = smul.u32 %s1303, 8
                %s1306 = scalar_lea.vmem %s1287, %s1304 [#allocation2]
                %s1307 = scalar_lea.vmem %s1289, %s1305
              $region88: #{tpu_custom_call.1} parent=75 // loop_footer
                %s1293 = sadd.s32 %s1291, 1
              $region89: #{tpu_custom_call.1} parent=75 // loop_footer_branch
                %1290 = sbr.rel target = $region85
              $region90: #{tpu_custom_call.1} parent=75 // loop_exit
                _
            $region76: #{tpu_custom_call.1} parent=67 // pred_fallthru
              _
          $region68: #{tpu_custom_call.1} parent=63 // pred_fallthru
            _
          %1370 = vnop
        $region64: #{tpu_custom_call.1} parent=59 // pred_fallthru
          _
      $region60: #{tpu_custom_call.1} parent=5 // pred_fallthru
        _
      %p1371 = scmp.le.s32.totalorder 2, %s16
      // Predicated region
      $region113: #{tpu_custom_call.1} parent=5 // pred_check
        %p1372 = pneg %p1371
      $region114: #{tpu_custom_call.1} parent=5 // pred_check_branch
        %1374 = sbr.rel (%p1372) target = $region116
      $region115: #{tpu_custom_call.1} parent=5 // pred_region
        %s1375 = ssub.s32 %s16, 2
        // Predicated region
        $region117: #{tpu_custom_call.1} parent=115 // pred_check
          %p1376 = pneg %p260
        $region118: #{tpu_custom_call.1} parent=115 // pred_check_branch
          %1378 = sbr.rel (%p1376) target = $region120
        $region119: #{tpu_custom_call.1} parent=115 // pred_region
          %s1379 = sand.u32 %s245, 1
          %s1380 = sand.u32 %s245, 1
          %s1381 = smul.addr %s1380, 64
          %s1382 = scalar_lea.vmem [#allocation2], %s1381
        $region120: #{tpu_custom_call.1} parent=115 // pred_fallthru
          _
      $region116: #{tpu_custom_call.1} parent=5 // pred_fallthru
        _
    $region6: #{tpu_custom_call.1} parent=1 // loop_footer
      %s20 = sadd.s32 1, %s16
    $region7: #{tpu_custom_call.1} parent=1 // loop_footer_branch
      %15 = sbr.rel target = $region3
    $region8: #{tpu_custom_call.1} parent=1 // loop_exit
      _

</llo_original>
